<compile_context>
chip_gen: v7x
topology: tpu7x:2x2x1
jax: 0.10.0
libtpu: 0.0.40
codegen_flags: <defaults>
</compile_context>

<pallas_src>
import functools
import math

import jax
import jax.numpy as jnp
from jax import lax
from jax.experimental import pallas as pl
from jax.experimental.pallas import tpu as pltpu


def _mha_kernel(x_ref, wqkv_ref, bqkv_ref, wo_ref, bo_ref, o_ref, *,
                num_heads, head_dim, use_mask):
    bb, S, E = x_ref.shape
    HD = num_heads * head_dim
    M = bb * S

    # ---- Fused QKV projection over the whole batch block --------------------
    # (bb, S, E) -> (bb*S, E): batch rows folded into the matmul M dimension so
    # one lane-dense MXU matmul covers every batch row of this grid step.
    x2d = x_ref[...].reshape(M, E)
    qkv = lax.dot_general(
        x2d.astype(jnp.bfloat16), wqkv_ref[...],           # weights pre-cast bf16
        dimension_numbers=(((1,), (0,)), ((), ())),
        preferred_element_type=jnp.float32)                 # (M, 3*HD) f32 acc
    qkv = qkv + bqkv_ref[...]                               # bias add in f32
    qkv = qkv.reshape(bb, S, 3 * HD)                        # Q already pre-scaled

    # Causal-mask bias: built ONCE per grid step at full (bb, S, S) shape so no
    # broadcast is re-issued inside the head loop; finite large-negative (rows
    # always keep the diagonal unmasked, so no NaN hazard).
    if use_mask:
        row = lax.broadcasted_iota(jnp.int32, (bb, S, S), 1)
        col = lax.broadcasted_iota(jnp.int32, (bb, S, S), 2)
        mask_bias = jnp.where(col > row,
                              jnp.finfo(jnp.float32).min, 0.0).astype(jnp.float32)

    # ---- Attention: per head, batched over the bb batch rows ----------------
    # Each head issues one batched Q@K^T and one batched P@V (leading batch dim
    # = bb) instead of bb separate tiny matmuls; the head output is contracted
    # straight into the output projection (no lane-axis concatenate).
    out_acc = jnp.zeros((M, E), jnp.float32)
    for h in range(num_heads):                              # static, unrolled
        q_sl = slice(h * head_dim, (h + 1) * head_dim)
        k_sl = slice(HD + h * head_dim, HD + (h + 1) * head_dim)
        v_sl = slice(2 * HD + h * head_dim, 2 * HD + (h + 1) * head_dim)
        qh = qkv[:, :, q_sl]                                # (bb, S, Dh) f32
        kh = qkv[:, :, k_sl]
        vh = qkv[:, :, v_sl]

        # Q@K^T without materializing a K transpose: contract last dims of both.
        score = jnp.einsum('bqd,bkd->bqk',
                           qh.astype(jnp.bfloat16), kh.astype(jnp.bfloat16),
                           preferred_element_type=jnp.float32)   # (bb, S, S) f32
        if use_mask:
            score = score + mask_bias

        # Softmax over the last axis (matches torch.softmax(dim=2)), kept in f32;
        # denominator reciprocal goes to the otherwise-idle EUP slot.
        score = score - jnp.max(score, axis=-1, keepdims=True)
        p = jnp.exp(score)
        p = p * pl.reciprocal(jnp.sum(p, axis=-1, keepdims=True), approx=True)

        attn = jnp.einsum('bqk,bkd->bqd',
                          p.astype(jnp.bfloat16), vh.astype(jnp.bfloat16),
                          preferred_element_type=jnp.float32)    # (bb, S, Dh)

        # Per-head slab of the output projection: out += attn_h @ Wo_h.
        # Accumulating partial products replaces the lane-offset concatenate and
        # realizes the (h, d) contraction of the review's suggestion.
        out_acc = out_acc + lax.dot_general(
            attn.reshape(M, head_dim).astype(jnp.bfloat16), wo_ref[h],
            dimension_numbers=(((1,), (0,)), ((), ())),
            preferred_element_type=jnp.float32)                  # (M, E)

    out = out_acc + bo_ref[...]                             # (M, E) + (1, E), f32
    o_ref[...] = out.reshape(bb, S, E).astype(o_ref.dtype)  # single lane-dense store


def multi_head_attention(x, params, *, num_heads, use_mask=False, batch_block=None):
    """x: (B, S, E) float32. params: fused-weight dict from init_params()."""
    B, S, E = x.shape
    wqkv = params["wqkv"]                 # (E, 3*HD) bf16
    HD3 = wqkv.shape[1]
    HD = HD3 // 3
    Dh = HD // num_heads

    if batch_block is None:
        batch_block = B                   # whole batch per grid step at small B
    assert B % batch_block == 0, "batch_block must divide B"

    kernel = functools.partial(_mha_kernel, num_heads=num_heads,
                               head_dim=Dh, use_mask=use_mask)

    return pl.pallas_call(
        kernel,
        out_shape=jax.ShapeDtypeStruct((B, S, E), jnp.float32),
        grid_spec=pltpu.PrefetchScalarGridSpec(
            num_scalar_prefetch=0,
            grid=(B // batch_block,),
            in_specs=[
                pl.BlockSpec((batch_block, S, E), lambda g: (g, 0, 0)),  # x block
                pl.BlockSpec((E, HD3), lambda g: (0, 0)),        # fused QKV weight (resident, bf16)
                pl.BlockSpec((1, HD3), lambda g: (0, 0)),        # fused QKV bias (f32)
                pl.BlockSpec((num_heads, Dh, E), lambda g: (0, 0, 0)),  # Wo as (H, Dh, E) (resident, bf16)
                pl.BlockSpec((1, E), lambda g: (0, 0)),          # output bias (f32)
            ],
            out_specs=pl.BlockSpec((batch_block, S, E), lambda g: (g, 0, 0)),
        ),
        compiler_params=pltpu.CompilerParams(
            dimension_semantics=("parallel",)),
    )(x, wqkv, params["bqkv"], params["wo3"], params["bo"])


def init_params(key, embedding_dim, attention_dim, num_heads):
    """nn.Linear-style init (uniform(-1/sqrt(fan_in), 1/sqrt(fan_in))).

    Returns (kernel_params, ref_params): fused/pre-cast layouts for the kernel
    and per-head full-precision layouts for the pure-JAX reference.
    """
    Dh = attention_dim // num_heads
    HD = num_heads * Dh
    ks = jax.random.split(key, 8)
    lim_in = 1.0 / math.sqrt(embedding_dim)
    lim_att = 1.0 / math.sqrt(attention_dim)

    def u(k, shape, lim):
        return jax.random.uniform(k, shape, jnp.float32, -lim, lim)

    # Per-head Linear(E, Dh) weights, pre-transposed to (E, Dh) and laid out
    # head-major along the output (lane) axis: (E, H*Dh).
    wq = u(ks[0], (embedding_dim, HD), lim_in)
    bq = u(ks[1], (HD,), lim_in)
    wk = u(ks[2], (embedding_dim, HD), lim_in)
    bk = u(ks[3], (HD,), lim_in)
    wv = u(ks[4], (embedding_dim, HD), lim_in)
    bv = u(ks[5], (HD,), lim_in)

    # Output projection Linear(attention_dim, embedding_dim): y = concat @ Wo^T + bo.
    wo_full = u(ks[6], (embedding_dim, attention_dim), lim_att)  # torch layout (E, HD)
    bo = u(ks[7], (1, embedding_dim), lim_att)

    # Fold 1/sqrt(Dh) into the Q weight AND bias; pre-cast matmul weights to bf16.
    scale = 1.0 / math.sqrt(Dh)
    kernel_params = {
        "wqkv": jnp.concatenate([wq * scale, wk, wv], axis=1).astype(jnp.bfloat16),
        "bqkv": jnp.concatenate([bq * scale, bk, bv])[None, :],          # (1, 3*HD) f32
        "wo3": wo_full.T.reshape(num_heads, Dh, embedding_dim).astype(jnp.bfloat16),
        "bo": bo,                                                        # (1, E) f32
    }
    ref_params = {"wq": wq, "bq": bq, "wk": wk, "bk": bk, "wv": wv, "bv": bv,
                  "wo_full": wo_full, "bo": bo}
    return kernel_params, ref_params


def reference_mha(x, ref_params, *, num_heads, use_mask=False):
    """Pure-JAX f32 reference mirroring the PyTorch module (per-head loop + concat)."""
    HD = ref_params["wq"].shape[1]
    Dh = HD // num_heads
    heads = []
    for h in range(num_heads):
        sl = slice(h * Dh, (h + 1) * Dh)
        q = x @ ref_params["wq"][:, sl] + ref_params["bq"][sl]
        k = x @ ref_params["wk"][:, sl] + ref_params["bk"][sl]
        v = x @ ref_params["wv"][:, sl] + ref_params["bv"][sl]
        score = q @ jnp.swapaxes(k, 1, 2) / math.sqrt(Dh)
        if use_mask:
            S = score.shape[-1]
            causal = jnp.triu(jnp.ones((S, S), bool), k=1)
            score = jnp.where(causal, -jnp.inf, score)
        heads.append(jax.nn.softmax(score, axis=2) @ v)
    concat = jnp.concatenate(heads, axis=2)
    return concat @ ref_params["wo_full"].T + ref_params["bo"][0]


if __name__ == "__main__":
    # Shapes consistent with the module: embedding_dim=32, attention_dim=32,
    # num_heads=4 -> per-head dim 8; batch=2, seq_len=8.
    B, S, E = 2, 8, 32
    attention_dim = 32
    H = 4

    key = jax.random.PRNGKey(0)
    kx, kp = jax.random.split(key)
    x = jax.random.normal(kx, (B, S, E), jnp.float32)
    kernel_params, ref_params = init_params(kp, E, attention_dim, H)

    for use_mask in (False, True):
        out = multi_head_attention(x, kernel_params, num_heads=H, use_mask=use_mask)
        out = jax.block_until_ready(out)
        ref = reference_mha(x, ref_params, num_heads=H, use_mask=use_mask)
        assert out.shape == (B, S, E)
        # Kernel uses bf16 MXU operands (f32 accumulation) + approx reciprocal,
        # so compare against the pure-f32 reference at bf16-level tolerance.
        err = jnp.max(jnp.abs(out - ref))
        assert jnp.allclose(out, ref, atol=3e-2, rtol=3e-2), (
            f"mismatch (use_mask={use_mask}): max abs err {err:.3e}")

    print("KERNEL_OK")
</pallas_src>

<mosaic_0001>
module attributes {stable_mosaic.version = 11 : i64} {
  func.func @_mha_kernel(%arg0: i32, %arg1: memref<2x8x32xf32, #tpu.memory_space<vmem>>, %arg2: memref<32x96xbf16, #tpu.memory_space<vmem>>, %arg3: memref<1x96xf32, #tpu.memory_space<vmem>>, %arg4: memref<4x8x32xbf16, #tpu.memory_space<vmem>>, %arg5: memref<1x32xf32, #tpu.memory_space<vmem>>, %arg6: memref<2x8x32xf32, #tpu.memory_space<vmem>>) attributes {dimension_semantics = [#tpu.dimension_semantics<parallel>], iteration_bounds = array<i64: 1>, scalar_prefetch = 0 : i64, scratch_operands = 0 : i64, tpu.core_type = #tpu.core_type<tc>, window_params = [{transform_indices = @transform_0, window_bounds = array<i64: 2, 8, 32>}, {pipeline_mode = #tpu.pipeline_mode<synchronous>, transform_indices = @transform_1, window_bounds = array<i64: 32, 96>}, {pipeline_mode = #tpu.pipeline_mode<synchronous>, transform_indices = @transform_2, window_bounds = array<i64: 1, 96>}, {pipeline_mode = #tpu.pipeline_mode<synchronous>, transform_indices = @transform_3, window_bounds = array<i64: 4, 8, 32>}, {pipeline_mode = #tpu.pipeline_mode<synchronous>, transform_indices = @transform_4, window_bounds = array<i64: 1, 32>}, {transform_indices = @transform_5, window_bounds = array<i64: 2, 8, 32>}]} {
    %c0 = arith.constant 0 : index
    %c0_0 = arith.constant 0 : index
    %c0_1 = arith.constant 0 : index
    %0 = vector.load %arg1[%c0, %c0_0, %c0_1] : memref<2x8x32xf32, #tpu.memory_space<vmem>>, vector<2x8x32xf32>
    %1 = vector.shape_cast %0 : vector<2x8x32xf32> to vector<16x32xf32>
    %2 = arith.truncf %1 : vector<16x32xf32> to vector<16x32xbf16>
    %c0_2 = arith.constant 0 : index
    %c0_3 = arith.constant 0 : index
    %3 = vector.load %arg2[%c0_2, %c0_3] : memref<32x96xbf16, #tpu.memory_space<vmem>>, vector<32x96xbf16>
    %cst = arith.constant dense<0.000000e+00> : vector<16x96xf32>
    %4 = tpu.matmul %2, %3, %cst {dimension_numbers = #tpu.dot_dimension_numbers<[1], [0], [0], [1], [0, 0, 1, 1], [], []>} : vector<16x32xbf16>, vector<32x96xbf16>, vector<16x96xf32> -> vector<16x96xf32>
    %c0_4 = arith.constant 0 : index
    %c0_5 = arith.constant 0 : index
    %5 = vector.load %arg3[%c0_4, %c0_5] : memref<1x96xf32, #tpu.memory_space<vmem>>, vector<1x96xf32>
    %6 = vector.broadcast %5 : vector<1x96xf32> to vector<16x96xf32>
    %7 = arith.addf %4, %6 : vector<16x96xf32>
    %8 = vector.shape_cast %7 : vector<16x96xf32> to vector<2x8x96xf32>
    %cst_6 = arith.constant 0.000000e+00 : f32
    %9 = vector.broadcast %cst_6 : f32 to vector<16x32xf32>
    %10 = vector.extract_strided_slice %8 {offsets = [0, 0, 0], sizes = [2, 8, 8], strides = [1, 1, 1]} : vector<2x8x96xf32> to vector<2x8x8xf32>
    %11 = vector.extract_strided_slice %8 {offsets = [0, 0, 32], sizes = [2, 8, 8], strides = [1, 1, 1]} : vector<2x8x96xf32> to vector<2x8x8xf32>
    %12 = vector.extract_strided_slice %8 {offsets = [0, 0, 64], sizes = [2, 8, 8], strides = [1, 1, 1]} : vector<2x8x96xf32> to vector<2x8x8xf32>
    %13 = arith.truncf %10 : vector<2x8x8xf32> to vector<2x8x8xbf16>
    %14 = arith.truncf %11 : vector<2x8x8xf32> to vector<2x8x8xbf16>
    "tpu.trace_start"() <{level = 10 : i32, message = "bqd,bkd->bqk"}> : () -> ()
    %cst_7 = arith.constant dense<0.000000e+00> : vector<2x8x8xf32>
    %15 = tpu.matmul %13, %14, %cst_7 {dimension_numbers = #tpu.dot_dimension_numbers<[2], [2], [1], [1], [0, 0, 0, 1, 1, 1], [0], [0]>} : vector<2x8x8xbf16>, vector<2x8x8xbf16>, vector<2x8x8xf32> -> vector<2x8x8xf32>
    "tpu.trace_stop"() : () -> ()
    %cst_8 = arith.constant dense<0xFF800000> : vector<2x8xf32>
    %16 = vector.multi_reduction <maximumf>, %15, %cst_8 [2] : vector<2x8x8xf32> to vector<2x8xf32>
    %17 = vector.shape_cast %16 : vector<2x8xf32> to vector<2x8x1xf32>
    %18 = vector.broadcast %17 : vector<2x8x1xf32> to vector<2x8x8xf32>
    %19 = arith.subf %15, %18 : vector<2x8x8xf32>
    %20 = math.exp %19 : vector<2x8x8xf32>
    %cst_9 = arith.constant dense<0.000000e+00> : vector<2x8xf32>
    %21 = vector.multi_reduction <add>, %20, %cst_9 [2] : vector<2x8x8xf32> to vector<2x8xf32>
    %22 = vector.shape_cast %21 : vector<2x8xf32> to vector<2x8x1xf32>
    %23 = tpu.reciprocal %22 {approx = true} : vector<2x8x1xf32> -> vector<2x8x1xf32>
    %24 = vector.broadcast %23 : vector<2x8x1xf32> to vector<2x8x8xf32>
    %25 = arith.mulf %20, %24 : vector<2x8x8xf32>
    %26 = arith.truncf %25 : vector<2x8x8xf32> to vector<2x8x8xbf16>
    %27 = arith.truncf %12 : vector<2x8x8xf32> to vector<2x8x8xbf16>
    "tpu.trace_start"() <{level = 10 : i32, message = "bqk,bkd->bqd"}> : () -> ()
    %cst_10 = arith.constant dense<0.000000e+00> : vector<2x8x8xf32>
    %28 = tpu.matmul %26, %27, %cst_10 {dimension_numbers = #tpu.dot_dimension_numbers<[2], [1], [1], [2], [0, 0, 0, 1, 1, 2], [0], [0]>} : vector<2x8x8xbf16>, vector<2x8x8xbf16>, vector<2x8x8xf32> -> vector<2x8x8xf32>
    "tpu.trace_stop"() : () -> ()
    %29 = vector.shape_cast %28 : vector<2x8x8xf32> to vector<16x8xf32>
    %30 = arith.truncf %29 : vector<16x8xf32> to vector<16x8xbf16>
    %c0_11 = arith.constant 0 : index
    %c0_12 = arith.constant 0 : index
    %c0_13 = arith.constant 0 : index
    %31 = vector.load %arg4[%c0_11, %c0_12, %c0_13] : memref<4x8x32xbf16, #tpu.memory_space<vmem>>, vector<1x8x32xbf16>
    %32 = vector.shape_cast %31 : vector<1x8x32xbf16> to vector<8x32xbf16>
    %cst_14 = arith.constant dense<0.000000e+00> : vector<16x32xf32>
    %33 = tpu.matmul %30, %32, %cst_14 {dimension_numbers = #tpu.dot_dimension_numbers<[1], [0], [0], [1], [0, 0, 1, 1], [], []>} : vector<16x8xbf16>, vector<8x32xbf16>, vector<16x32xf32> -> vector<16x32xf32>
    %34 = arith.addf %9, %33 : vector<16x32xf32>
    %35 = vector.extract_strided_slice %8 {offsets = [0, 0, 8], sizes = [2, 8, 8], strides = [1, 1, 1]} : vector<2x8x96xf32> to vector<2x8x8xf32>
    %36 = vector.extract_strided_slice %8 {offsets = [0, 0, 40], sizes = [2, 8, 8], strides = [1, 1, 1]} : vector<2x8x96xf32> to vector<2x8x8xf32>
    %37 = vector.extract_strided_slice %8 {offsets = [0, 0, 72], sizes = [2, 8, 8], strides = [1, 1, 1]} : vector<2x8x96xf32> to vector<2x8x8xf32>
    %38 = arith.truncf %35 : vector<2x8x8xf32> to vector<2x8x8xbf16>
    %39 = arith.truncf %36 : vector<2x8x8xf32> to vector<2x8x8xbf16>
    "tpu.trace_start"() <{level = 10 : i32, message = "bqd,bkd->bqk"}> : () -> ()
    %cst_15 = arith.constant dense<0.000000e+00> : vector<2x8x8xf32>
    %40 = tpu.matmul %38, %39, %cst_15 {dimension_numbers = #tpu.dot_dimension_numbers<[2], [2], [1], [1], [0, 0, 0, 1, 1, 1], [0], [0]>} : vector<2x8x8xbf16>, vector<2x8x8xbf16>, vector<2x8x8xf32> -> vector<2x8x8xf32>
    "tpu.trace_stop"() : () -> ()
    %cst_16 = arith.constant dense<0xFF800000> : vector<2x8xf32>
    %41 = vector.multi_reduction <maximumf>, %40, %cst_16 [2] : vector<2x8x8xf32> to vector<2x8xf32>
    %42 = vector.shape_cast %41 : vector<2x8xf32> to vector<2x8x1xf32>
    %43 = vector.broadcast %42 : vector<2x8x1xf32> to vector<2x8x8xf32>
    %44 = arith.subf %40, %43 : vector<2x8x8xf32>
    %45 = math.exp %44 : vector<2x8x8xf32>
    %cst_17 = arith.constant dense<0.000000e+00> : vector<2x8xf32>
    %46 = vector.multi_reduction <add>, %45, %cst_17 [2] : vector<2x8x8xf32> to vector<2x8xf32>
    %47 = vector.shape_cast %46 : vector<2x8xf32> to vector<2x8x1xf32>
    %48 = tpu.reciprocal %47 {approx = true} : vector<2x8x1xf32> -> vector<2x8x1xf32>
    %49 = vector.broadcast %48 : vector<2x8x1xf32> to vector<2x8x8xf32>
    %50 = arith.mulf %45, %49 : vector<2x8x8xf32>
    %51 = arith.truncf %50 : vector<2x8x8xf32> to vector<2x8x8xbf16>
    %52 = arith.truncf %37 : vector<2x8x8xf32> to vector<2x8x8xbf16>
    "tpu.trace_start"() <{level = 10 : i32, message = "bqk,bkd->bqd"}> : () -> ()
    %cst_18 = arith.constant dense<0.000000e+00> : vector<2x8x8xf32>
    %53 = tpu.matmul %51, %52, %cst_18 {dimension_numbers = #tpu.dot_dimension_numbers<[2], [1], [1], [2], [0, 0, 0, 1, 1, 2], [0], [0]>} : vector<2x8x8xbf16>, vector<2x8x8xbf16>, vector<2x8x8xf32> -> vector<2x8x8xf32>
    "tpu.trace_stop"() : () -> ()
    %54 = vector.shape_cast %53 : vector<2x8x8xf32> to vector<16x8xf32>
    %55 = arith.truncf %54 : vector<16x8xf32> to vector<16x8xbf16>
    %c1 = arith.constant 1 : index
    %c0_19 = arith.constant 0 : index
    %c0_20 = arith.constant 0 : index
    %56 = vector.load %arg4[%c1, %c0_19, %c0_20] : memref<4x8x32xbf16, #tpu.memory_space<vmem>>, vector<1x8x32xbf16>
    %57 = vector.shape_cast %56 : vector<1x8x32xbf16> to vector<8x32xbf16>
    %cst_21 = arith.constant dense<0.000000e+00> : vector<16x32xf32>
    %58 = tpu.matmul %55, %57, %cst_21 {dimension_numbers = #tpu.dot_dimension_numbers<[1], [0], [0], [1], [0, 0, 1, 1], [], []>} : vector<16x8xbf16>, vector<8x32xbf16>, vector<16x32xf32> -> vector<16x32xf32>
    %59 = arith.addf %34, %58 : vector<16x32xf32>
    %60 = vector.extract_strided_slice %8 {offsets = [0, 0, 16], sizes = [2, 8, 8], strides = [1, 1, 1]} : vector<2x8x96xf32> to vector<2x8x8xf32>
    %61 = vector.extract_strided_slice %8 {offsets = [0, 0, 48], sizes = [2, 8, 8], strides = [1, 1, 1]} : vector<2x8x96xf32> to vector<2x8x8xf32>
    %62 = vector.extract_strided_slice %8 {offsets = [0, 0, 80], sizes = [2, 8, 8], strides = [1, 1, 1]} : vector<2x8x96xf32> to vector<2x8x8xf32>
    %63 = arith.truncf %60 : vector<2x8x8xf32> to vector<2x8x8xbf16>
    %64 = arith.truncf %61 : vector<2x8x8xf32> to vector<2x8x8xbf16>
    "tpu.trace_start"() <{level = 10 : i32, message = "bqd,bkd->bqk"}> : () -> ()
    %cst_22 = arith.constant dense<0.000000e+00> : vector<2x8x8xf32>
    %65 = tpu.matmul %63, %64, %cst_22 {dimension_numbers = #tpu.dot_dimension_numbers<[2], [2], [1], [1], [0, 0, 0, 1, 1, 1], [0], [0]>} : vector<2x8x8xbf16>, vector<2x8x8xbf16>, vector<2x8x8xf32> -> vector<2x8x8xf32>
    "tpu.trace_stop"() : () -> ()
    %cst_23 = arith.constant dense<0xFF800000> : vector<2x8xf32>
    %66 = vector.multi_reduction <maximumf>, %65, %cst_23 [2] : vector<2x8x8xf32> to vector<2x8xf32>
    %67 = vector.shape_cast %66 : vector<2x8xf32> to vector<2x8x1xf32>
    %68 = vector.broadcast %67 : vector<2x8x1xf32> to vector<2x8x8xf32>
    %69 = arith.subf %65, %68 : vector<2x8x8xf32>
    %70 = math.exp %69 : vector<2x8x8xf32>
    %cst_24 = arith.constant dense<0.000000e+00> : vector<2x8xf32>
    %71 = vector.multi_reduction <add>, %70, %cst_24 [2] : vector<2x8x8xf32> to vector<2x8xf32>
    %72 = vector.shape_cast %71 : vector<2x8xf32> to vector<2x8x1xf32>
    %73 = tpu.reciprocal %72 {approx = true} : vector<2x8x1xf32> -> vector<2x8x1xf32>
    %74 = vector.broadcast %73 : vector<2x8x1xf32> to vector<2x8x8xf32>
    %75 = arith.mulf %70, %74 : vector<2x8x8xf32>
    %76 = arith.truncf %75 : vector<2x8x8xf32> to vector<2x8x8xbf16>
    %77 = arith.truncf %62 : vector<2x8x8xf32> to vector<2x8x8xbf16>
    "tpu.trace_start"() <{level = 10 : i32, message = "bqk,bkd->bqd"}> : () -> ()
    %cst_25 = arith.constant dense<0.000000e+00> : vector<2x8x8xf32>
    %78 = tpu.matmul %76, %77, %cst_25 {dimension_numbers = #tpu.dot_dimension_numbers<[2], [1], [1], [2], [0, 0, 0, 1, 1, 2], [0], [0]>} : vector<2x8x8xbf16>, vector<2x8x8xbf16>, vector<2x8x8xf32> -> vector<2x8x8xf32>
    "tpu.trace_stop"() : () -> ()
    %79 = vector.shape_cast %78 : vector<2x8x8xf32> to vector<16x8xf32>
    %80 = arith.truncf %79 : vector<16x8xf32> to vector<16x8xbf16>
    %c2 = arith.constant 2 : index
    %c0_26 = arith.constant 0 : index
    %c0_27 = arith.constant 0 : index
    %81 = vector.load %arg4[%c2, %c0_26, %c0_27] : memref<4x8x32xbf16, #tpu.memory_space<vmem>>, vector<1x8x32xbf16>
    %82 = vector.shape_cast %81 : vector<1x8x32xbf16> to vector<8x32xbf16>
    %cst_28 = arith.constant dense<0.000000e+00> : vector<16x32xf32>
    %83 = tpu.matmul %80, %82, %cst_28 {dimension_numbers = #tpu.dot_dimension_numbers<[1], [0], [0], [1], [0, 0, 1, 1], [], []>} : vector<16x8xbf16>, vector<8x32xbf16>, vector<16x32xf32> -> vector<16x32xf32>
    %84 = arith.addf %59, %83 : vector<16x32xf32>
    %85 = vector.extract_strided_slice %8 {offsets = [0, 0, 24], sizes = [2, 8, 8], strides = [1, 1, 1]} : vector<2x8x96xf32> to vector<2x8x8xf32>
    %86 = vector.extract_strided_slice %8 {offsets = [0, 0, 56], sizes = [2, 8, 8], strides = [1, 1, 1]} : vector<2x8x96xf32> to vector<2x8x8xf32>
    %87 = vector.extract_strided_slice %8 {offsets = [0, 0, 88], sizes = [2, 8, 8], strides = [1, 1, 1]} : vector<2x8x96xf32> to vector<2x8x8xf32>
    %88 = arith.truncf %85 : vector<2x8x8xf32> to vector<2x8x8xbf16>
    %89 = arith.truncf %86 : vector<2x8x8xf32> to vector<2x8x8xbf16>
    "tpu.trace_start"() <{level = 10 : i32, message = "bqd,bkd->bqk"}> : () -> ()
    %cst_29 = arith.constant dense<0.000000e+00> : vector<2x8x8xf32>
    %90 = tpu.matmul %88, %89, %cst_29 {dimension_numbers = #tpu.dot_dimension_numbers<[2], [2], [1], [1], [0, 0, 0, 1, 1, 1], [0], [0]>} : vector<2x8x8xbf16>, vector<2x8x8xbf16>, vector<2x8x8xf32> -> vector<2x8x8xf32>
    "tpu.trace_stop"() : () -> ()
    %cst_30 = arith.constant dense<0xFF800000> : vector<2x8xf32>
    %91 = vector.multi_reduction <maximumf>, %90, %cst_30 [2] : vector<2x8x8xf32> to vector<2x8xf32>
    %92 = vector.shape_cast %91 : vector<2x8xf32> to vector<2x8x1xf32>
    %93 = vector.broadcast %92 : vector<2x8x1xf32> to vector<2x8x8xf32>
    %94 = arith.subf %90, %93 : vector<2x8x8xf32>
    %95 = math.exp %94 : vector<2x8x8xf32>
    %cst_31 = arith.constant dense<0.000000e+00> : vector<2x8xf32>
    %96 = vector.multi_reduction <add>, %95, %cst_31 [2] : vector<2x8x8xf32> to vector<2x8xf32>
    %97 = vector.shape_cast %96 : vector<2x8xf32> to vector<2x8x1xf32>
    %98 = tpu.reciprocal %97 {approx = true} : vector<2x8x1xf32> -> vector<2x8x1xf32>
    %99 = vector.broadcast %98 : vector<2x8x1xf32> to vector<2x8x8xf32>
    %100 = arith.mulf %95, %99 : vector<2x8x8xf32>
    %101 = arith.truncf %100 : vector<2x8x8xf32> to vector<2x8x8xbf16>
    %102 = arith.truncf %87 : vector<2x8x8xf32> to vector<2x8x8xbf16>
    "tpu.trace_start"() <{level = 10 : i32, message = "bqk,bkd->bqd"}> : () -> ()
    %cst_32 = arith.constant dense<0.000000e+00> : vector<2x8x8xf32>
    %103 = tpu.matmul %101, %102, %cst_32 {dimension_numbers = #tpu.dot_dimension_numbers<[2], [1], [1], [2], [0, 0, 0, 1, 1, 2], [0], [0]>} : vector<2x8x8xbf16>, vector<2x8x8xbf16>, vector<2x8x8xf32> -> vector<2x8x8xf32>
    "tpu.trace_stop"() : () -> ()
    %104 = vector.shape_cast %103 : vector<2x8x8xf32> to vector<16x8xf32>
    %105 = arith.truncf %104 : vector<16x8xf32> to vector<16x8xbf16>
    %c3 = arith.constant 3 : index
    %c0_33 = arith.constant 0 : index
    %c0_34 = arith.constant 0 : index
    %106 = vector.load %arg4[%c3, %c0_33, %c0_34] : memref<4x8x32xbf16, #tpu.memory_space<vmem>>, vector<1x8x32xbf16>
    %107 = vector.shape_cast %106 : vector<1x8x32xbf16> to vector<8x32xbf16>
    %cst_35 = arith.constant dense<0.000000e+00> : vector<16x32xf32>
    %108 = tpu.matmul %105, %107, %cst_35 {dimension_numbers = #tpu.dot_dimension_numbers<[1], [0], [0], [1], [0, 0, 1, 1], [], []>} : vector<16x8xbf16>, vector<8x32xbf16>, vector<16x32xf32> -> vector<16x32xf32>
    %109 = arith.addf %84, %108 : vector<16x32xf32>
    %c0_36 = arith.constant 0 : index
    %c0_37 = arith.constant 0 : index
    %110 = vector.load %arg5[%c0_36, %c0_37] : memref<1x32xf32, #tpu.memory_space<vmem>>, vector<1x32xf32>
    %111 = vector.broadcast %110 : vector<1x32xf32> to vector<16x32xf32>
    %112 = arith.addf %109, %111 : vector<16x32xf32>
    %113 = vector.shape_cast %112 : vector<16x32xf32> to vector<2x8x32xf32>
    %c0_38 = arith.constant 0 : index
    %c0_39 = arith.constant 0 : index
    %c0_40 = arith.constant 0 : index
    %114 = vector.load %arg6[%c0_38, %c0_39, %c0_40] : memref<2x8x32xf32, #tpu.memory_space<vmem>>, vector<2x8x32xf32>
    tpu.vector_store %arg6[%c0_38, %c0_39, %c0_40], %113 {strides = array<i32>} : memref<2x8x32xf32, #tpu.memory_space<vmem>>, vector<2x8x32xf32>,
    return
  }
  func.func @transform_0(%arg0: i32) -> (i32, i32, i32) {
    %c0_i32 = arith.constant 0 : i32
    %c0_i32_0 = arith.constant 0 : i32
    %c0_i32_1 = arith.constant 0 : i32
    return %arg0, %c0_i32, %c0_i32_0 : i32, i32, i32
  }
  func.func @transform_1(%arg0: i32) -> (i32, i32) {
    %c0_i32 = arith.constant 0 : i32
    %c0_i32_0 = arith.constant 0 : i32
    %c0_i32_1 = arith.constant 0 : i32
    return %c0_i32, %c0_i32_0 : i32, i32
  }
  func.func @transform_2(%arg0: i32) -> (i32, i32) {
    %c0_i32 = arith.constant 0 : i32
    %c0_i32_0 = arith.constant 0 : i32
    %c0_i32_1 = arith.constant 0 : i32
    return %c0_i32, %c0_i32_0 : i32, i32
  }
  func.func @transform_3(%arg0: i32) -> (i32, i32, i32) {
    %c0_i32 = arith.constant 0 : i32
    %c0_i32_0 = arith.constant 0 : i32
    %c0_i32_1 = arith.constant 0 : i32
    %c0_i32_2 = arith.constant 0 : i32
    return %c0_i32, %c0_i32_0, %c0_i32_1 : i32, i32, i32
  }
  func.func @transform_4(%arg0: i32) -> (i32, i32) {
    %c0_i32 = arith.constant 0 : i32
    %c0_i32_0 = arith.constant 0 : i32
    %c0_i32_1 = arith.constant 0 : i32
    return %c0_i32, %c0_i32_0 : i32, i32
  }
  func.func @transform_5(%arg0: i32) -> (i32, i32, i32) {
    %c0_i32 = arith.constant 0 : i32
    %c0_i32_0 = arith.constant 0 : i32
    %c0_i32_1 = arith.constant 0 : i32
    return %arg0, %c0_i32, %c0_i32_0 : i32, i32, i32
  }
}

</mosaic_0001>

<llo_original>
// kernel: tpu_custom_call.1
$region0: #{tpu_custom_call.1}
  #allocation0 [shape = 'u32[]', space=smem, size = 0x4, offset = 0x4, fixed_abs, tag = 'smem constant byte address 0x4 - core index']
  #allocation1 [shape = 'u32[144,128]{1,0:T(1,128)}', space=vmem, size = 0x12000, scoped, tag = 'internal scratch']
  %s0 = inlined_call_operand.hbm [shape: f32[2,8,32], index: 0, kind: input, shape index: {}]
  %s1 = inlined_call_operand.hbm [shape: bf16[32,96], index: 1, kind: input, shape index: {}]
  %s2 = inlined_call_operand.vmem [shape: f32[1,96], index: 2, kind: input, shape index: {}]
  %s3 = inlined_call_operand.hbm [shape: bf16[4,8,32], index: 3, kind: input, shape index: {}]
  %s4 = inlined_call_operand.vmem [shape: f32[1,32], index: 4, kind: input, shape index: {}]
  %s5 = inlined_call_operand.hbm [shape: f32[2,8,32], index: 5, kind: output, shape index: {}]
  %s6 = sld [smem:[#allocation0]]
  $region42: #{tpu_custom_call.1} parent=0
    _
  %s8 = ssub.s32 1, %s6
  %s9 = scalar_select 0, %s8, %s6
  $region1: #{tpu_custom_call.1} parent=0
    #allocation2 [shape = 'u8[8192]{0}', space=vmem, size = 0x2000, scoped, tag = 'input window, operand 0, single buffered']
    #allocation3 [shape = 's32[1]{0}', space=sflag, size = 0x4, scoped, tag = 'scoped memory for tpu_custom_call.1']
    #allocation4 [shape = 's32[1]{0}', space=sflag, size = 0x4, scoped, tag = 'scoped memory for tpu_custom_call.1']
    #allocation5 [shape = 'u8[8192]{0}', space=vmem, size = 0x2000, scoped, tag = 'input window, operand 1, single buffered']
    #allocation6 [shape = 's32[1]{0}', space=sflag, size = 0x4, scoped, tag = 'scoped memory for tpu_custom_call.1']
    #allocation7 [shape = 'u8[8192]{0}', space=vmem, size = 0x2000, scoped, tag = 'input window, operand 3, single buffered']
    #allocation8 [shape = 'u8[8192]{0}', space=vmem, size = 0x2000, scoped, tag = 'output window, operand 0, single buffered']
    %10 = vsyncpa [#allocation3], 0
    %11 = vsyncpa [#allocation6], 0
    %12 = vsyncpa [#allocation4], 0
    // Predicated region
    $region2: #{tpu_custom_call.1} parent=1 // pred_check
      _
    $region3: #{tpu_custom_call.1} parent=1 // pred_check_branch
      %14 = sbr.rel (0) target = $region5
    $region4: #{tpu_custom_call.1} parent=1 // pred_region
      %s16 = ssub.s32 256, 256
      %17 = vsyncadd [#allocation3], %s16
      %s18 = sshll.u32 [#allocation2], 4
      %s19 = int_to_ptr.vmem [resolvable:$true] %s18
      %24 = dma.hbm_to_vmem [thread:$0]  %s0, 256, %s19, [#allocation3], 128, 128, 8
    $region5: #{tpu_custom_call.1} parent=1 // pred_fallthru
      _
    // Predicated region
    $region6: #{tpu_custom_call.1} parent=1 // pred_check
      _
    $region7: #{tpu_custom_call.1} parent=1 // pred_check_branch
      %26 = sbr.rel (0) target = $region9
    $region8: #{tpu_custom_call.1} parent=1 // pred_region
      %s28 = ssub.s32 256, 256
      %29 = vsyncadd [#allocation6], %s28
      %s30 = sshll.u32 [#allocation5], 4
      %s31 = int_to_ptr.vmem [resolvable:$true] %s30
      %36 = dma.hbm_to_vmem [thread:$0]  %s1, 256, %s31, [#allocation6], 64, 64, 4
    $region9: #{tpu_custom_call.1} parent=1 // pred_fallthru
      _
    // Predicated region
    $region10: #{tpu_custom_call.1} parent=1 // pred_check
      _
    $region11: #{tpu_custom_call.1} parent=1 // pred_check_branch
      %38 = sbr.rel (0) target = $region13
    $region12: #{tpu_custom_call.1} parent=1 // pred_region
      _
    $region13: #{tpu_custom_call.1} parent=1 // pred_fallthru
      _
    // Predicated region
    $region14: #{tpu_custom_call.1} parent=1 // pred_check
      _
    $region15: #{tpu_custom_call.1} parent=1 // pred_check_branch
      %40 = sbr.rel (0) target = $region17
    $region16: #{tpu_custom_call.1} parent=1 // pred_region
      %s42 = ssub.s32 256, 256
      %43 = vsyncadd [#allocation6], %s42
      %s44 = sshll.u32 [#allocation7], 4
      %s45 = int_to_ptr.vmem [resolvable:$true] %s44
      %50 = dma.hbm_to_vmem [thread:$0]  %s3, 256, %s45, [#allocation6], 64, 64, 4
    $region17: #{tpu_custom_call.1} parent=1 // pred_fallthru
      _
    // Predicated region
    $region18: #{tpu_custom_call.1} parent=1 // pred_check
      _
    $region19: #{tpu_custom_call.1} parent=1 // pred_check_branch
      %52 = sbr.rel (0) target = $region21
    $region20: #{tpu_custom_call.1} parent=1 // pred_region
      _
    $region21: #{tpu_custom_call.1} parent=1 // pred_fallthru
      _
    // Predicated region
    $region22: #{tpu_custom_call.1} parent=1 // pred_check
      _
    $region23: #{tpu_custom_call.1} parent=1 // pred_check_branch
      %54 = sbr.rel (0) target = $region25
    $region24: #{tpu_custom_call.1} parent=1 // pred_region
      %55 = dma.done [#allocation3], 256
    $region25: #{tpu_custom_call.1} parent=1 // pred_fallthru
      _
    // Predicated region
    $region26: #{tpu_custom_call.1} parent=1 // pred_check
      _
    $region27: #{tpu_custom_call.1} parent=1 // pred_check_branch
      %57 = sbr.rel (0) target = $region29
    $region28: #{tpu_custom_call.1} parent=1 // pred_region
      %58 = dma.done [#allocation6], 256
    $region29: #{tpu_custom_call.1} parent=1 // pred_fallthru
      _
    // Predicated region
    $region30: #{tpu_custom_call.1} parent=1 // pred_check
      _
    $region31: #{tpu_custom_call.1} parent=1 // pred_check_branch
      %60 = sbr.rel (0) target = $region33
    $region32: #{tpu_custom_call.1} parent=1 // pred_region
      %61 = dma.done [#allocation6], 256
    $region33: #{tpu_custom_call.1} parent=1 // pred_fallthru
      _
    %v63 = vld [vmem:[#allocation2] sm:$0xff]
    %v64 = vld [vmem:[#allocation2 + $0x8] sm:$0xff]
    %v65 = vpack.c.bf16 %v64, %v63
    %v66 = vld [vmem:[#allocation5] sm:$0xf]
    %v67 = vld [vmem:[#allocation5 + $0x4] sm:$0xf]
    %v68 = vld [vmem:[#allocation5 + $0x8] sm:$0xf]
    %v69 = vld [vmem:[#allocation5 + $0xc] sm:$0xf]
    %v70 = vld [vmem:[%s2] sm:$0x1]
    %v72 = vlaneseq
    %v73 = vshrl.u32 %v72, 7
    %v74 = vsub.s32 0, %v73
    %v75 = vrot.slane %v70, %v74
    %v81 = vunpack.c.l.b16 %v66
    %v82 = vunpack.c.l.b16 %v67
    %v83 = vunpack.c.l.b16 %v68
    %v84 = vunpack.c.l.b16 %v69
    %v85 = vpack.c.b16 %v82, %v81
    %v86 = vpack.c.b16 %v84, %v83
    %vm89 = vcmask 261120
    %v91 = vsel %vm89, %v65, 0
    %93 = vmatprep.subr.bf16.mxu0 0
    %94 = vmatpush1.bf16.msra.mxu0 %v85
    %95 = vmatprep.subr.bf16.mxu0 0
    %96 = vmatpush1.bf16.msra.mxu0 %v86
    %97 = vmatprep.subr.bf16.mxu0 0
    %98 = vmatpush1.bf16.msra.mxu0 0
    %99 = vmatprep.subr.bf16.mxu0 0
    %100 = vmatpush1.bf16.msra.mxu0 0
    %101 = vmatprep.subr.bf16.mxu0 0
    %102 = vmatpush1.bf16.msra.mxu0 0
    %103 = vmatprep.subr.bf16.mxu0 0
    %104 = vmatpush1.bf16.msra.mxu0 0
    %105 = vmatprep.subr.bf16.mxu0 0
    %106 = vmatpush1.bf16.msra.mxu0 0
    %107 = vmatprep.subr.bf16.mxu0 0
    %108 = vmatpush1.bf16.msra.mxu0 0
    %109 = vmatprep.subr.bf16.mxu0 0
    %110 = vmatpush1.bf16.msra.mxu0 0
    %111 = vmatprep.subr.bf16.mxu0 0
    %112 = vmatpush1.bf16.msra.mxu0 0
    %113 = vmatprep.subr.bf16.mxu0 0
    %114 = vmatpush1.bf16.msra.mxu0 0
    %115 = vmatprep.subr.bf16.mxu0 0
    %116 = vmatpush1.bf16.msra.mxu0 0
    %117 = vmatprep.subr.bf16.mxu0 0
    %118 = vmatpush1.bf16.msra.mxu0 0
    %119 = vmatprep.subr.bf16.mxu0 0
    %120 = vmatpush1.bf16.msra.mxu0 0
    %121 = vmatprep.subr.bf16.mxu0 0
    %122 = vmatpush1.bf16.msra.mxu0 0
    %123 = vmatprep.subr.bf16.mxu0 0
    %124 = vmatpush1.bf16.msra.mxu0 0
    %125 = vmatprep.mubr.bf16.mxu0 0
    %126 = vmatmul.mubr.bf16.gmra.mrb[0].mxu0 %v91
    %v127 = vpop.f32.mrb[0].mxu0
    %v128 = vadd.f32 %v75, %v127
    %v129 = vpop.f32.mrb[0].mxu0
    %v130 = vpop.f32.mrb[0].mxu0
    %v131 = vadd.f32 %v75, %v130
    %v132 = vpop.f32.mrb[0].mxu0
    %133 = vdwg.mxu0
    %v134 = vpack.c.bf16 %v128, %v128
    %v135 = vpack.c.bf16 %v131, %v131
    %137 = vrot.lane.b32.xlu0 %v134, 96
    %v138 = vpop.permute.xlu0 %137
    %vm139 = vcmask 64512
    %v141 = vsel %vm139, %v134, 0
    %v144 = vsel %vm139, %v138, 0
    %146 = vmatprep.subr.bf16.mxu0 0
    %147 = vmatpush1.bf16.xpose.msra.mxu0 %v144
    %148 = vmatprep.subr.bf16.mxu0 0
    %149 = vmatpush1.bf16.xpose.msra.mxu0 0
    %150 = vmatprep.subr.bf16.mxu0 0
    %151 = vmatpush1.bf16.xpose.msra.mxu0 0
    %152 = vmatprep.subr.bf16.mxu0 0
    %153 = vmatpush1.bf16.xpose.msra.mxu0 0
    %154 = vmatprep.subr.bf16.mxu0 0
    %155 = vmatpush1.bf16.xpose.msra.mxu0 0
    %156 = vmatprep.subr.bf16.mxu0 0
    %157 = vmatpush1.bf16.xpose.msra.mxu0 0
    %158 = vmatprep.subr.bf16.mxu0 0
    %159 = vmatpush1.bf16.xpose.msra.mxu0 0
    %160 = vmatprep.subr.bf16.mxu0 0
    %161 = vmatpush1.bf16.xpose.msra.mxu0 0
    %162 = vmatprep.subr.bf16.mxu0 0
    %163 = vmatpush1.bf16.xpose.msra.mxu0 0
    %164 = vmatprep.subr.bf16.mxu0 0
    %165 = vmatpush1.bf16.xpose.msra.mxu0 0
    %166 = vmatprep.subr.bf16.mxu0 0
    %167 = vmatpush1.bf16.xpose.msra.mxu0 0
    %168 = vmatprep.subr.bf16.mxu0 0
    %169 = vmatpush1.bf16.xpose.msra.mxu0 0
    %170 = vmatprep.subr.bf16.mxu0 0
    %171 = vmatpush1.bf16.xpose.msra.mxu0 0
    %172 = vmatprep.subr.bf16.mxu0 0
    %173 = vmatpush1.bf16.xpose.msra.mxu0 0
    %174 = vmatprep.subr.bf16.mxu0 0
    %175 = vmatpush1.bf16.xpose.msra.mxu0 0
    %176 = vmatprep.subr.bf16.mxu0 0
    %177 = vmatpush1.bf16.xpose.msra.mxu0 0
    %178 = vmatprep.mubr.bf16.mxu0 0
    %179 = vmatmul.mubr.bf16.gmra.mrb[0].mxu0 %v141
    %v180 = vpop.f32.mrb[0].mxu0
    %v181 = vadd.f32 0.0, %v180
    %v182 = vpop.f32.mrb[0].mxu0
    %v183 = vpop.f32.mrb[0].mxu0
    %v184 = vpop.f32.mrb[0].mxu0
    %185 = vdwg.mxu0
    %187 = vrot.lane.b32.xlu0 %v135, 96
    %v188 = vpop.permute.xlu0 %187
    %v190 = vsel %vm139, %v135, 0
    %v193 = vsel %vm139, %v188, 0
    %195 = vmatprep.subr.bf16.mxu0 0
    %196 = vmatpush1.bf16.xpose.msra.mxu0 %v193
    %197 = vmatprep.subr.bf16.mxu0 0
    %198 = vmatpush1.bf16.xpose.msra.mxu0 0
    %199 = vmatprep.subr.bf16.mxu0 0
    %200 = vmatpush1.bf16.xpose.msra.mxu0 0
    %201 = vmatprep.subr.bf16.mxu0 0
    %202 = vmatpush1.bf16.xpose.msra.mxu0 0
    %203 = vmatprep.subr.bf16.mxu0 0
    %204 = vmatpush1.bf16.xpose.msra.mxu0 0
    %205 = vmatprep.subr.bf16.mxu0 0
    %206 = vmatpush1.bf16.xpose.msra.mxu0 0
    %207 = vmatprep.subr.bf16.mxu0 0
    %208 = vmatpush1.bf16.xpose.msra.mxu0 0
    %209 = vmatprep.subr.bf16.mxu0 0
    %210 = vmatpush1.bf16.xpose.msra.mxu0 0
    %211 = vmatprep.subr.bf16.mxu0 0
    %212 = vmatpush1.bf16.xpose.msra.mxu0 0
    %213 = vmatprep.subr.bf16.mxu0 0
    %214 = vmatpush1.bf16.xpose.msra.mxu0 0
    %215 = vmatprep.subr.bf16.mxu0 0
    %216 = vmatpush1.bf16.xpose.msra.mxu0 0
    %217 = vmatprep.subr.bf16.mxu0 0
    %218 = vmatpush1.bf16.xpose.msra.mxu0 0
    %219 = vmatprep.subr.bf16.mxu0 0
    %220 = vmatpush1.bf16.xpose.msra.mxu0 0
    %221 = vmatprep.subr.bf16.mxu0 0
    %222 = vmatpush1.bf16.xpose.msra.mxu0 0
    %223 = vmatprep.subr.bf16.mxu0 0
    %224 = vmatpush1.bf16.xpose.msra.mxu0 0
    %225 = vmatprep.subr.bf16.mxu0 0
    %226 = vmatpush1.bf16.xpose.msra.mxu0 0
    %227 = vmatprep.mubr.bf16.mxu0 0
    %228 = vmatmul.mubr.bf16.gmra.mrb[0].mxu0 %v190
    %v229 = vpop.f32.mrb[0].mxu0
    %v230 = vadd.f32 0.0, %v229
    %v231 = vpop.f32.mrb[0].mxu0
    %v232 = vpop.f32.mrb[0].mxu0
    %v233 = vpop.f32.mrb[0].mxu0
    %234 = vdwg.mxu0
    %v235 = vsel %vm139, %v181, -inf
    %236 = vmax.xlane.f32.xlu0 %v235
    %v237 = vpop.xlane.xlu0 %236
    %v238 = vsel %vm139, %v230, -inf
    %239 = vmax.xlane.f32.xlu0 %v238
    %v240 = vpop.xlane.xlu0 %239
    %v241 = vsub.f32 %v181, %v237
    %v242 = vsub.f32 %v230, %v240
    %v243 = vmul.f32 %v241, 1.442695
    %v244 = vpow.pop %v243
    %v245 = vmul.f32 %v242, 1.442695
    %v246 = vpow.pop %v245
    %v247 = vsel %vm139, %v244, 0.0
    %248 = vadd.xlane.f32.xlu0 %v247
    %v249 = vpop.xlane.xlu0 %248
    %v250 = vsel %vm139, %v246, 0.0
    %251 = vadd.xlane.f32.xlu0 %v250
    %v252 = vpop.xlane.xlu0 %251
    %v253 = vrcp.pop %v249
    %v254 = vrcp.pop %v252
    %v255 = vmul.f32 %v244, %v253
    %v256 = vmul.f32 %v246, %v254
    %v257 = vpack.c.bf16 %v255, %v255
    %v258 = vpack.c.bf16 %v256, %v256
    %259 = vrot.lane.b32.xlu0 %v134, 64
    %v260 = vpop.permute.xlu0 %259
    %v262 = vsel %vm139, %v257, 0
    %vm264 = vcmask 1043456
    %v266 = vsel %vm264, %v260, 0
    %268 = vmatprep.subr.bf16.mxu0 0
    %269 = vmatpush1.bf16.msra.mxu0 %v266
    %270 = vmatprep.subr.bf16.mxu0 0
    %271 = vmatpush1.bf16.msra.mxu0 0
    %272 = vmatprep.subr.bf16.mxu0 0
    %273 = vmatpush1.bf16.msra.mxu0 0
    %274 = vmatprep.subr.bf16.mxu0 0
    %275 = vmatpush1.bf16.msra.mxu0 0
    %276 = vmatprep.subr.bf16.mxu0 0
    %277 = vmatpush1.bf16.msra.mxu0 0
    %278 = vmatprep.subr.bf16.mxu0 0
    %279 = vmatpush1.bf16.msra.mxu0 0
    %280 = vmatprep.subr.bf16.mxu0 0
    %281 = vmatpush1.bf16.msra.mxu0 0
    %282 = vmatprep.subr.bf16.mxu0 0
    %283 = vmatpush1.bf16.msra.mxu0 0
    %284 = vmatprep.subr.bf16.mxu0 0
    %285 = vmatpush1.bf16.msra.mxu0 0
    %286 = vmatprep.subr.bf16.mxu0 0
    %287 = vmatpush1.bf16.msra.mxu0 0
    %288 = vmatprep.subr.bf16.mxu0 0
    %289 = vmatpush1.bf16.msra.mxu0 0
    %290 = vmatprep.subr.bf16.mxu0 0
    %291 = vmatpush1.bf16.msra.mxu0 0
    %292 = vmatprep.subr.bf16.mxu0 0
    %293 = vmatpush1.bf16.msra.mxu0 0
    %294 = vmatprep.subr.bf16.mxu0 0
    %295 = vmatpush1.bf16.msra.mxu0 0
    %296 = vmatprep.subr.bf16.mxu0 0
    %297 = vmatpush1.bf16.msra.mxu0 0
    %298 = vmatprep.subr.bf16.mxu0 0
    %299 = vmatpush1.bf16.msra.mxu0 0
    %300 = vmatprep.mubr.bf16.mxu0 0
    %301 = vmatmul.mubr.bf16.gmra.mrb[0].mxu0 %v262
    %v302 = vpop.f32.mrb[0].mxu0
    %v303 = vadd.f32 0.0, %v302
    %v304 = vpop.f32.mrb[0].mxu0
    %v305 = vpop.f32.mrb[0].mxu0
    %v306 = vpop.f32.mrb[0].mxu0
    %307 = vdwg.mxu0
    %308 = vrot.lane.b32.xlu0 %v135, 64
    %v309 = vpop.permute.xlu0 %308
    %v311 = vsel %vm139, %v258, 0
    %v314 = vsel %vm264, %v309, 0
    %316 = vmatprep.subr.bf16.mxu0 0
    %317 = vmatpush1.bf16.msra.mxu0 %v314
    %318 = vmatprep.subr.bf16.mxu0 0
    %319 = vmatpush1.bf16.msra.mxu0 0
    %320 = vmatprep.subr.bf16.mxu0 0
    %321 = vmatpush1.bf16.msra.mxu0 0
    %322 = vmatprep.subr.bf16.mxu0 0
    %323 = vmatpush1.bf16.msra.mxu0 0
    %324 = vmatprep.subr.bf16.mxu0 0
    %325 = vmatpush1.bf16.msra.mxu0 0
    %326 = vmatprep.subr.bf16.mxu0 0
    %327 = vmatpush1.bf16.msra.mxu0 0
    %328 = vmatprep.subr.bf16.mxu0 0
    %329 = vmatpush1.bf16.msra.mxu0 0
    %330 = vmatprep.subr.bf16.mxu0 0
    %331 = vmatpush1.bf16.msra.mxu0 0
    %332 = vmatprep.subr.bf16.mxu0 0
    %333 = vmatpush1.bf16.msra.mxu0 0
    %334 = vmatprep.subr.bf16.mxu0 0
    %335 = vmatpush1.bf16.msra.mxu0 0
    %336 = vmatprep.subr.bf16.mxu0 0
    %337 = vmatpush1.bf16.msra.mxu0 0
    %338 = vmatprep.subr.bf16.mxu0 0
    %339 = vmatpush1.bf16.msra.mxu0 0
    %340 = vmatprep.subr.bf16.mxu0 0
    %341 = vmatpush1.bf16.msra.mxu0 0
    %342 = vmatprep.subr.bf16.mxu0 0
    %343 = vmatpush1.bf16.msra.mxu0 0
    %344 = vmatprep.subr.bf16.mxu0 0
    %345 = vmatpush1.bf16.msra.mxu0 0
    %346 = vmatprep.subr.bf16.mxu0 0
    %347 = vmatpush1.bf16.msra.mxu0 0
    %348 = vmatprep.mubr.bf16.mxu0 0
    %349 = vmatmul.mubr.bf16.gmra.mrb[0].mxu0 %v311
    %v350 = vpop.f32.mrb[0].mxu0
    %v351 = vadd.f32 0.0, %v350
    %v352 = vpop.f32.mrb[0].mxu0
    %v353 = vpop.f32.mrb[0].mxu0
    %v354 = vpop.f32.mrb[0].mxu0
    %355 = vdwg.mxu0
    %v356 = vpack.c.bf16 %v351, %v303
    %v357 = vld [vmem:[#allocation7] sm:$0xf]
    %358 = vrot.lane.b32.xlu0 %v134, 120
    %v359 = vpop.permute.xlu0 %358
    %360 = vrot.lane.b32.xlu0 %v134, 88
    %v361 = vpop.permute.xlu0 %360
    %v363 = vsel %vm139, %v359, 0
    %v366 = vsel %vm139, %v361, 0
    %368 = vmatprep.subr.bf16.mxu0 0
    %369 = vmatpush1.bf16.xpose.msra.mxu0 %v366
    %370 = vmatprep.subr.bf16.mxu0 0
    %371 = vmatpush1.bf16.xpose.msra.mxu0 0
    %372 = vmatprep.subr.bf16.mxu0 0
    %373 = vmatpush1.bf16.xpose.msra.mxu0 0
    %374 = vmatprep.subr.bf16.mxu0 0
    %375 = vmatpush1.bf16.xpose.msra.mxu0 0
    %376 = vmatprep.subr.bf16.mxu0 0
    %377 = vmatpush1.bf16.xpose.msra.mxu0 0
    %378 = vmatprep.subr.bf16.mxu0 0
    %379 = vmatpush1.bf16.xpose.msra.mxu0 0
    %380 = vmatprep.subr.bf16.mxu0 0
    %381 = vmatpush1.bf16.xpose.msra.mxu0 0
    %382 = vmatprep.subr.bf16.mxu0 0
    %383 = vmatpush1.bf16.xpose.msra.mxu0 0
    %384 = vmatprep.subr.bf16.mxu0 0
    %385 = vmatpush1.bf16.xpose.msra.mxu0 0
    %386 = vmatprep.subr.bf16.mxu0 0
    %387 = vmatpush1.bf16.xpose.msra.mxu0 0
    %388 = vmatprep.subr.bf16.mxu0 0
    %389 = vmatpush1.bf16.xpose.msra.mxu0 0
    %390 = vmatprep.subr.bf16.mxu0 0
    %391 = vmatpush1.bf16.xpose.msra.mxu0 0
    %392 = vmatprep.subr.bf16.mxu0 0
    %393 = vmatpush1.bf16.xpose.msra.mxu0 0
    %394 = vmatprep.subr.bf16.mxu0 0
    %395 = vmatpush1.bf16.xpose.msra.mxu0 0
    %396 = vmatprep.subr.bf16.mxu0 0
    %397 = vmatpush1.bf16.xpose.msra.mxu0 0
    %398 = vmatprep.subr.bf16.mxu0 0
    %399 = vmatpush1.bf16.xpose.msra.mxu0 0
    %400 = vmatprep.mubr.bf16.mxu0 0
    %401 = vmatmul.mubr.bf16.gmra.mrb[0].mxu0 %v363
    %v402 = vpop.f32.mrb[0].mxu0
    %v403 = vadd.f32 0.0, %v402
    %v404 = vpop.f32.mrb[0].mxu0
    %v405 = vpop.f32.mrb[0].mxu0
    %v406 = vpop.f32.mrb[0].mxu0
    %407 = vdwg.mxu0
    %408 = vrot.lane.b32.xlu0 %v135, 120
    %v409 = vpop.permute.xlu0 %408
    %410 = vrot.lane.b32.xlu0 %v135, 88
    %v411 = vpop.permute.xlu0 %410
    %v413 = vsel %vm139, %v409, 0
    %v416 = vsel %vm139, %v411, 0
    %418 = vmatprep.subr.bf16.mxu0 0
    %419 = vmatpush1.bf16.xpose.msra.mxu0 %v416
    %420 = vmatprep.subr.bf16.mxu0 0
    %421 = vmatpush1.bf16.xpose.msra.mxu0 0
    %422 = vmatprep.subr.bf16.mxu0 0
    %423 = vmatpush1.bf16.xpose.msra.mxu0 0
    %424 = vmatprep.subr.bf16.mxu0 0
    %425 = vmatpush1.bf16.xpose.msra.mxu0 0
    %426 = vmatprep.subr.bf16.mxu0 0
    %427 = vmatpush1.bf16.xpose.msra.mxu0 0
    %428 = vmatprep.subr.bf16.mxu0 0
    %429 = vmatpush1.bf16.xpose.msra.mxu0 0
    %430 = vmatprep.subr.bf16.mxu0 0
    %431 = vmatpush1.bf16.xpose.msra.mxu0 0
    %432 = vmatprep.subr.bf16.mxu0 0
    %433 = vmatpush1.bf16.xpose.msra.mxu0 0
    %434 = vmatprep.subr.bf16.mxu0 0
    %435 = vmatpush1.bf16.xpose.msra.mxu0 0
    %436 = vmatprep.subr.bf16.mxu0 0
    %437 = vmatpush1.bf16.xpose.msra.mxu0 0
    %438 = vmatprep.subr.bf16.mxu0 0
    %439 = vmatpush1.bf16.xpose.msra.mxu0 0
    %440 = vmatprep.subr.bf16.mxu0 0
    %441 = vmatpush1.bf16.xpose.msra.mxu0 0
    %442 = vmatprep.subr.bf16.mxu0 0
    %443 = vmatpush1.bf16.xpose.msra.mxu0 0
    %444 = vmatprep.subr.bf16.mxu0 0
    %445 = vmatpush1.bf16.xpose.msra.mxu0 0
    %446 = vmatprep.subr.bf16.mxu0 0
    %447 = vmatpush1.bf16.xpose.msra.mxu0 0
    %448 = vmatprep.subr.bf16.mxu0 0
    %449 = vmatpush1.bf16.xpose.msra.mxu0 0
    %450 = vmatprep.mubr.bf16.mxu0 0
    %451 = vmatmul.mubr.bf16.gmra.mrb[0].mxu0 %v413
    %v452 = vpop.f32.mrb[0].mxu0
    %v453 = vadd.f32 0.0, %v452
    %v454 = vpop.f32.mrb[0].mxu0
    %v455 = vpop.f32.mrb[0].mxu0
    %v456 = vpop.f32.mrb[0].mxu0
    %457 = vdwg.mxu0
    %v458 = vsel %vm139, %v403, -inf
    %459 = vmax.xlane.f32.xlu0 %v458
    %v460 = vpop.xlane.xlu0 %459
    %v461 = vsel %vm139, %v453, -inf
    %462 = vmax.xlane.f32.xlu0 %v461
    %v463 = vpop.xlane.xlu0 %462
    %v464 = vsub.f32 %v403, %v460
    %v465 = vsub.f32 %v453, %v463
    %v466 = vmul.f32 %v464, 1.442695
    %v467 = vpow.pop %v466
    %v468 = vmul.f32 %v465, 1.442695
    %v469 = vpow.pop %v468
    %v470 = vsel %vm139, %v467, 0.0
    %471 = vadd.xlane.f32.xlu0 %v470
    %v472 = vpop.xlane.xlu0 %471
    %v473 = vsel %vm139, %v469, 0.0
    %474 = vadd.xlane.f32.xlu0 %v473
    %v475 = vpop.xlane.xlu0 %474
    %v476 = vrcp.pop %v472
    %v477 = vrcp.pop %v475
    %v478 = vmul.f32 %v467, %v476
    %v479 = vmul.f32 %v469, %v477
    %v480 = vpack.c.bf16 %v478, %v478
    %v481 = vpack.c.bf16 %v479, %v479
    %482 = vrot.lane.b32.xlu0 %v134, 56
    %v483 = vpop.permute.xlu0 %482
    %v485 = vsel %vm139, %v480, 0
    %v488 = vsel %vm264, %v483, 0
    %490 = vmatprep.subr.bf16.mxu0 0
    %491 = vmatpush1.bf16.msra.mxu0 %v488
    %492 = vmatprep.subr.bf16.mxu0 0
    %493 = vmatpush1.bf16.msra.mxu0 0
    %494 = vmatprep.subr.bf16.mxu0 0
    %495 = vmatpush1.bf16.msra.mxu0 0
    %496 = vmatprep.subr.bf16.mxu0 0
    %497 = vmatpush1.bf16.msra.mxu0 0
    %498 = vmatprep.subr.bf16.mxu0 0
    %499 = vmatpush1.bf16.msra.mxu0 0
    %500 = vmatprep.subr.bf16.mxu0 0
    %501 = vmatpush1.bf16.msra.mxu0 0
    %502 = vmatprep.subr.bf16.mxu0 0
    %503 = vmatpush1.bf16.msra.mxu0 0
    %504 = vmatprep.subr.bf16.mxu0 0
    %505 = vmatpush1.bf16.msra.mxu0 0
    %506 = vmatprep.subr.bf16.mxu0 0
    %507 = vmatpush1.bf16.msra.mxu0 0
    %508 = vmatprep.subr.bf16.mxu0 0
    %509 = vmatpush1.bf16.msra.mxu0 0
    %510 = vmatprep.subr.bf16.mxu0 0
    %511 = vmatpush1.bf16.msra.mxu0 0
    %512 = vmatprep.subr.bf16.mxu0 0
    %513 = vmatpush1.bf16.msra.mxu0 0
    %514 = vmatprep.subr.bf16.mxu0 0
    %515 = vmatpush1.bf16.msra.mxu0 0
    %516 = vmatprep.subr.bf16.mxu0 0
    %517 = vmatpush1.bf16.msra.mxu0 0
    %518 = vmatprep.subr.bf16.mxu0 0
    %519 = vmatpush1.bf16.msra.mxu0 0
    %520 = vmatprep.subr.bf16.mxu0 0
    %521 = vmatpush1.bf16.msra.mxu0 0
    %522 = vmatprep.mubr.bf16.mxu0 0
    %523 = vmatmul.mubr.bf16.gmra.mrb[0].mxu0 %v485
    %v524 = vpop.f32.mrb[0].mxu0
    %v525 = vadd.f32 0.0, %v524
    %v526 = vpop.f32.mrb[0].mxu0
    %v527 = vpop.f32.mrb[0].mxu0
    %v528 = vpop.f32.mrb[0].mxu0
    %529 = vdwg.mxu0
    %530 = vrot.lane.b32.xlu0 %v135, 56
    %v531 = vpop.permute.xlu0 %530
    %v533 = vsel %vm139, %v481, 0
    %v536 = vsel %vm264, %v531, 0
    %538 = vmatprep.subr.bf16.mxu0 0
    %539 = vmatpush1.bf16.msra.mxu0 %v536
    %540 = vmatprep.subr.bf16.mxu0 0
    %541 = vmatpush1.bf16.msra.mxu0 0
    %542 = vmatprep.subr.bf16.mxu0 0
    %543 = vmatpush1.bf16.msra.mxu0 0
    %544 = vmatprep.subr.bf16.mxu0 0
    %545 = vmatpush1.bf16.msra.mxu0 0
    %546 = vmatprep.subr.bf16.mxu0 0
    %547 = vmatpush1.bf16.msra.mxu0 0
    %548 = vmatprep.subr.bf16.mxu0 0
    %549 = vmatpush1.bf16.msra.mxu0 0
    %550 = vmatprep.subr.bf16.mxu0 0
    %551 = vmatpush1.bf16.msra.mxu0 0
    %552 = vmatprep.subr.bf16.mxu0 0
    %553 = vmatpush1.bf16.msra.mxu0 0
    %554 = vmatprep.subr.bf16.mxu0 0
    %555 = vmatpush1.bf16.msra.mxu0 0
    %556 = vmatprep.subr.bf16.mxu0 0
    %557 = vmatpush1.bf16.msra.mxu0 0
    %558 = vmatprep.subr.bf16.mxu0 0
    %559 = vmatpush1.bf16.msra.mxu0 0
    %560 = vmatprep.subr.bf16.mxu0 0
    %561 = vmatpush1.bf16.msra.mxu0 0
    %562 = vmatprep.subr.bf16.mxu0 0
    %563 = vmatpush1.bf16.msra.mxu0 0
    %564 = vmatprep.subr.bf16.mxu0 0
    %565 = vmatpush1.bf16.msra.mxu0 0
    %566 = vmatprep.subr.bf16.mxu0 0
    %567 = vmatpush1.bf16.msra.mxu0 0
    %568 = vmatprep.subr.bf16.mxu0 0
    %569 = vmatpush1.bf16.msra.mxu0 0
    %570 = vmatprep.mubr.bf16.mxu0 0
    %571 = vmatmul.mubr.bf16.gmra.mrb[0].mxu0 %v533
    %v572 = vpop.f32.mrb[0].mxu0
    %v573 = vadd.f32 0.0, %v572
    %v574 = vpop.f32.mrb[0].mxu0
    %v575 = vpop.f32.mrb[0].mxu0
    %v576 = vpop.f32.mrb[0].mxu0
    %577 = vdwg.mxu0
    %v578 = vpack.c.bf16 %v573, %v525
    %s579 = scalar_lea.vmem [#allocation7], 4
    %v580 = vld [vmem:[%s579] sm:$0xf]
    %v582 = vsel %vm139, %v578, 0
    %v585 = vsel %vm264, %v580, 0
    %587 = vmatprep.subr.bf16.mxu0 0
    %588 = vmatpush1.bf16.msra.mxu0 %v585
    %589 = vmatprep.subr.bf16.mxu0 0
    %590 = vmatpush1.bf16.msra.mxu0 0
    %591 = vmatprep.subr.bf16.mxu0 0
    %592 = vmatpush1.bf16.msra.mxu0 0
    %593 = vmatprep.subr.bf16.mxu0 0
    %594 = vmatpush1.bf16.msra.mxu0 0
    %595 = vmatprep.subr.bf16.mxu0 0
    %596 = vmatpush1.bf16.msra.mxu0 0
    %597 = vmatprep.subr.bf16.mxu0 0
    %598 = vmatpush1.bf16.msra.mxu0 0
    %599 = vmatprep.subr.bf16.mxu0 0
    %600 = vmatpush1.bf16.msra.mxu0 0
    %601 = vmatprep.subr.bf16.mxu0 0
    %602 = vmatpush1.bf16.msra.mxu0 0
    %603 = vmatprep.subr.bf16.mxu0 0
    %604 = vmatpush1.bf16.msra.mxu0 0
    %605 = vmatprep.subr.bf16.mxu0 0
    %606 = vmatpush1.bf16.msra.mxu0 0
    %607 = vmatprep.subr.bf16.mxu0 0
    %608 = vmatpush1.bf16.msra.mxu0 0
    %609 = vmatprep.subr.bf16.mxu0 0
    %610 = vmatpush1.bf16.msra.mxu0 0
    %611 = vmatprep.subr.bf16.mxu0 0
    %612 = vmatpush1.bf16.msra.mxu0 0
    %613 = vmatprep.subr.bf16.mxu0 0
    %614 = vmatpush1.bf16.msra.mxu0 0
    %615 = vmatprep.subr.bf16.mxu0 0
    %616 = vmatpush1.bf16.msra.mxu0 0
    %617 = vmatprep.subr.bf16.mxu0 0
    %618 = vmatpush1.bf16.msra.mxu0 0
    %619 = vmatprep.mubr.bf16.mxu0 0
    %620 = vmatmul.mubr.bf16.gmra.mrb[0].mxu0 %v582
    %v621 = vpop.f32.mrb[0].mxu0
    %v622 = vadd.f32 0.0, %v621
    %v623 = vpop.f32.mrb[0].mxu0
    %v624 = vpop.f32.mrb[0].mxu0
    %v625 = vadd.f32 0.0, %v624
    %v626 = vpop.f32.mrb[0].mxu0
    %627 = vdwg.mxu0
    %v629 = vsel %vm139, %v356, 0
    %v632 = vsel %vm264, %v357, 0
    %634 = vmatprep.subr.bf16.mxu0 0
    %635 = vmatpush1.bf16.msra.mxu0 %v632
    %636 = vmatprep.subr.bf16.mxu0 0
    %637 = vmatpush1.bf16.msra.mxu0 0
    %638 = vmatprep.subr.bf16.mxu0 0
    %639 = vmatpush1.bf16.msra.mxu0 0
    %640 = vmatprep.subr.bf16.mxu0 0
    %641 = vmatpush1.bf16.msra.mxu0 0
    %642 = vmatprep.subr.bf16.mxu0 0
    %643 = vmatpush1.bf16.msra.mxu0 0
    %644 = vmatprep.subr.bf16.mxu0 0
    %645 = vmatpush1.bf16.msra.mxu0 0
    %646 = vmatprep.subr.bf16.mxu0 0
    %647 = vmatpush1.bf16.msra.mxu0 0
    %648 = vmatprep.subr.bf16.mxu0 0
    %649 = vmatpush1.bf16.msra.mxu0 0
    %650 = vmatprep.subr.bf16.mxu0 0
    %651 = vmatpush1.bf16.msra.mxu0 0
    %652 = vmatprep.subr.bf16.mxu0 0
    %653 = vmatpush1.bf16.msra.mxu0 0
    %654 = vmatprep.subr.bf16.mxu0 0
    %655 = vmatpush1.bf16.msra.mxu0 0
    %656 = vmatprep.subr.bf16.mxu0 0
    %657 = vmatpush1.bf16.msra.mxu0 0
    %658 = vmatprep.subr.bf16.mxu0 0
    %659 = vmatpush1.bf16.msra.mxu0 0
    %660 = vmatprep.subr.bf16.mxu0 0
    %661 = vmatpush1.bf16.msra.mxu0 0
    %662 = vmatprep.subr.bf16.mxu0 0
    %663 = vmatpush1.bf16.msra.mxu0 0
    %664 = vmatprep.subr.bf16.mxu0 0
    %665 = vmatpush1.bf16.msra.mxu0 0
    %666 = vmatprep.mubr.bf16.mxu0 0
    %667 = vmatmul.mubr.bf16.gmra.mrb[0].mxu0 %v629
    %v668 = vpop.f32.mrb[0].mxu0
    %v669 = vadd.f32 %v622, %v668
    %v670 = vpop.f32.mrb[0].mxu0
    %v671 = vpop.f32.mrb[0].mxu0
    %v672 = vadd.f32 %v625, %v671
    %v673 = vpop.f32.mrb[0].mxu0
    %674 = vdwg.mxu0
    %675 = vrot.lane.b32.xlu0 %v134, 112
    %v676 = vpop.permute.xlu0 %675
    %677 = vrot.lane.b32.xlu0 %v134, 80
    %v678 = vpop.permute.xlu0 %677
    %v680 = vsel %vm139, %v676, 0
    %v683 = vsel %vm139, %v678, 0
    %685 = vmatprep.subr.bf16.mxu0 0
    %686 = vmatpush1.bf16.xpose.msra.mxu0 %v683
    %687 = vmatprep.subr.bf16.mxu0 0
    %688 = vmatpush1.bf16.xpose.msra.mxu0 0
    %689 = vmatprep.subr.bf16.mxu0 0
    %690 = vmatpush1.bf16.xpose.msra.mxu0 0
    %691 = vmatprep.subr.bf16.mxu0 0
    %692 = vmatpush1.bf16.xpose.msra.mxu0 0
    %693 = vmatprep.subr.bf16.mxu0 0
    %694 = vmatpush1.bf16.xpose.msra.mxu0 0
    %695 = vmatprep.subr.bf16.mxu0 0
    %696 = vmatpush1.bf16.xpose.msra.mxu0 0
    %697 = vmatprep.subr.bf16.mxu0 0
    %698 = vmatpush1.bf16.xpose.msra.mxu0 0
    %699 = vmatprep.subr.bf16.mxu0 0
    %700 = vmatpush1.bf16.xpose.msra.mxu0 0
    %701 = vmatprep.subr.bf16.mxu0 0
    %702 = vmatpush1.bf16.xpose.msra.mxu0 0
    %703 = vmatprep.subr.bf16.mxu0 0
    %704 = vmatpush1.bf16.xpose.msra.mxu0 0
    %705 = vmatprep.subr.bf16.mxu0 0
    %706 = vmatpush1.bf16.xpose.msra.mxu0 0
    %707 = vmatprep.subr.bf16.mxu0 0
    %708 = vmatpush1.bf16.xpose.msra.mxu0 0
    %709 = vmatprep.subr.bf16.mxu0 0
    %710 = vmatpush1.bf16.xpose.msra.mxu0 0
    %711 = vmatprep.subr.bf16.mxu0 0
    %712 = vmatpush1.bf16.xpose.msra.mxu0 0
    %713 = vmatprep.subr.bf16.mxu0 0
    %714 = vmatpush1.bf16.xpose.msra.mxu0 0
    %715 = vmatprep.subr.bf16.mxu0 0
    %716 = vmatpush1.bf16.xpose.msra.mxu0 0
    %717 = vmatprep.mubr.bf16.mxu0 0
    %718 = vmatmul.mubr.bf16.gmra.mrb[0].mxu0 %v680
    %v719 = vpop.f32.mrb[0].mxu0
    %v720 = vadd.f32 0.0, %v719
    %v721 = vpop.f32.mrb[0].mxu0
    %v722 = vpop.f32.mrb[0].mxu0
    %v723 = vpop.f32.mrb[0].mxu0
    %724 = vdwg.mxu0
    %725 = vrot.lane.b32.xlu0 %v135, 112
    %v726 = vpop.permute.xlu0 %725
    %727 = vrot.lane.b32.xlu0 %v135, 80
    %v728 = vpop.permute.xlu0 %727
    %v730 = vsel %vm139, %v726, 0
    %v733 = vsel %vm139, %v728, 0
    %735 = vmatprep.subr.bf16.mxu0 0
    %736 = vmatpush1.bf16.xpose.msra.mxu0 %v733
    %737 = vmatprep.subr.bf16.mxu0 0
    %738 = vmatpush1.bf16.xpose.msra.mxu0 0
    %739 = vmatprep.subr.bf16.mxu0 0
    %740 = vmatpush1.bf16.xpose.msra.mxu0 0
    %741 = vmatprep.subr.bf16.mxu0 0
    %742 = vmatpush1.bf16.xpose.msra.mxu0 0
    %743 = vmatprep.subr.bf16.mxu0 0
    %744 = vmatpush1.bf16.xpose.msra.mxu0 0
    %745 = vmatprep.subr.bf16.mxu0 0
    %746 = vmatpush1.bf16.xpose.msra.mxu0 0
    %747 = vmatprep.subr.bf16.mxu0 0
    %748 = vmatpush1.bf16.xpose.msra.mxu0 0
    %749 = vmatprep.subr.bf16.mxu0 0
    %750 = vmatpush1.bf16.xpose.msra.mxu0 0
    %751 = vmatprep.subr.bf16.mxu0 0
    %752 = vmatpush1.bf16.xpose.msra.mxu0 0
    %753 = vmatprep.subr.bf16.mxu0 0
    %754 = vmatpush1.bf16.xpose.msra.mxu0 0
    %755 = vmatprep.subr.bf16.mxu0 0
    %756 = vmatpush1.bf16.xpose.msra.mxu0 0
    %757 = vmatprep.subr.bf16.mxu0 0
    %758 = vmatpush1.bf16.xpose.msra.mxu0 0
    %759 = vmatprep.subr.bf16.mxu0 0
    %760 = vmatpush1.bf16.xpose.msra.mxu0 0
    %761 = vmatprep.subr.bf16.mxu0 0
    %762 = vmatpush1.bf16.xpose.msra.mxu0 0
    %763 = vmatprep.subr.bf16.mxu0 0
    %764 = vmatpush1.bf16.xpose.msra.mxu0 0
    %765 = vmatprep.subr.bf16.mxu0 0
    %766 = vmatpush1.bf16.xpose.msra.mxu0 0
    %767 = vmatprep.mubr.bf16.mxu0 0
    %768 = vmatmul.mubr.bf16.gmra.mrb[0].mxu0 %v730
    %v769 = vpop.f32.mrb[0].mxu0
    %v770 = vadd.f32 0.0, %v769
    %v771 = vpop.f32.mrb[0].mxu0
    %v772 = vpop.f32.mrb[0].mxu0
    %v773 = vpop.f32.mrb[0].mxu0
    %774 = vdwg.mxu0
    %v775 = vsel %vm139, %v720, -inf
    %776 = vmax.xlane.f32.xlu0 %v775
    %v777 = vpop.xlane.xlu0 %776
    %v778 = vsel %vm139, %v770, -inf
    %779 = vmax.xlane.f32.xlu0 %v778
    %v780 = vpop.xlane.xlu0 %779
    %v781 = vsub.f32 %v720, %v777
    %v782 = vsub.f32 %v770, %v780
    %v783 = vmul.f32 %v781, 1.442695
    %v784 = vpow.pop %v783
    %v785 = vmul.f32 %v782, 1.442695
    %v786 = vpow.pop %v785
    %v787 = vsel %vm139, %v784, 0.0
    %788 = vadd.xlane.f32.xlu0 %v787
    %v789 = vpop.xlane.xlu0 %788
    %v790 = vsel %vm139, %v786, 0.0
    %791 = vadd.xlane.f32.xlu0 %v790
    %v792 = vpop.xlane.xlu0 %791
    %v793 = vrcp.pop %v789
    %v794 = vrcp.pop %v792
    %v795 = vmul.f32 %v784, %v793
    %v796 = vmul.f32 %v786, %v794
    %v797 = vpack.c.bf16 %v795, %v795
    %v798 = vpack.c.bf16 %v796, %v796
    %799 = vrot.lane.b32.xlu0 %v134, 48
    %v800 = vpop.permute.xlu0 %799
    %v802 = vsel %vm139, %v797, 0
    %v805 = vsel %vm264, %v800, 0
    %807 = vmatprep.subr.bf16.mxu0 0
    %808 = vmatpush1.bf16.msra.mxu0 %v805
    %809 = vmatprep.subr.bf16.mxu0 0
    %810 = vmatpush1.bf16.msra.mxu0 0
    %811 = vmatprep.subr.bf16.mxu0 0
    %812 = vmatpush1.bf16.msra.mxu0 0
    %813 = vmatprep.subr.bf16.mxu0 0
    %814 = vmatpush1.bf16.msra.mxu0 0
    %815 = vmatprep.subr.bf16.mxu0 0
    %816 = vmatpush1.bf16.msra.mxu0 0
    %817 = vmatprep.subr.bf16.mxu0 0
    %818 = vmatpush1.bf16.msra.mxu0 0
    %819 = vmatprep.subr.bf16.mxu0 0
    %820 = vmatpush1.bf16.msra.mxu0 0
    %821 = vmatprep.subr.bf16.mxu0 0
    %822 = vmatpush1.bf16.msra.mxu0 0
    %823 = vmatprep.subr.bf16.mxu0 0
    %824 = vmatpush1.bf16.msra.mxu0 0
    %825 = vmatprep.subr.bf16.mxu0 0
    %826 = vmatpush1.bf16.msra.mxu0 0
    %827 = vmatprep.subr.bf16.mxu0 0
    %828 = vmatpush1.bf16.msra.mxu0 0
    %829 = vmatprep.subr.bf16.mxu0 0
    %830 = vmatpush1.bf16.msra.mxu0 0
    %831 = vmatprep.subr.bf16.mxu0 0
    %832 = vmatpush1.bf16.msra.mxu0 0
    %833 = vmatprep.subr.bf16.mxu0 0
    %834 = vmatpush1.bf16.msra.mxu0 0
    %835 = vmatprep.subr.bf16.mxu0 0
    %836 = vmatpush1.bf16.msra.mxu0 0
    %837 = vmatprep.subr.bf16.mxu0 0
    %838 = vmatpush1.bf16.msra.mxu0 0
    %839 = vmatprep.mubr.bf16.mxu0 0
    %840 = vmatmul.mubr.bf16.gmra.mrb[0].mxu0 %v802
    %v841 = vpop.f32.mrb[0].mxu0
    %v842 = vadd.f32 0.0, %v841
    %v843 = vpop.f32.mrb[0].mxu0
    %v844 = vpop.f32.mrb[0].mxu0
    %v845 = vpop.f32.mrb[0].mxu0
    %846 = vdwg.mxu0
    %847 = vrot.lane.b32.xlu0 %v135, 48
    %v848 = vpop.permute.xlu0 %847
    %v850 = vsel %vm139, %v798, 0
    %v853 = vsel %vm264, %v848, 0
    %855 = vmatprep.subr.bf16.mxu0 0
    %856 = vmatpush1.bf16.msra.mxu0 %v853
    %857 = vmatprep.subr.bf16.mxu0 0
    %858 = vmatpush1.bf16.msra.mxu0 0
    %859 = vmatprep.subr.bf16.mxu0 0
    %860 = vmatpush1.bf16.msra.mxu0 0
    %861 = vmatprep.subr.bf16.mxu0 0
    %862 = vmatpush1.bf16.msra.mxu0 0
    %863 = vmatprep.subr.bf16.mxu0 0
    %864 = vmatpush1.bf16.msra.mxu0 0
    %865 = vmatprep.subr.bf16.mxu0 0
    %866 = vmatpush1.bf16.msra.mxu0 0
    %867 = vmatprep.subr.bf16.mxu0 0
    %868 = vmatpush1.bf16.msra.mxu0 0
    %869 = vmatprep.subr.bf16.mxu0 0
    %870 = vmatpush1.bf16.msra.mxu0 0
    %871 = vmatprep.subr.bf16.mxu0 0
    %872 = vmatpush1.bf16.msra.mxu0 0
    %873 = vmatprep.subr.bf16.mxu0 0
    %874 = vmatpush1.bf16.msra.mxu0 0
    %875 = vmatprep.subr.bf16.mxu0 0
    %876 = vmatpush1.bf16.msra.mxu0 0
    %877 = vmatprep.subr.bf16.mxu0 0
    %878 = vmatpush1.bf16.msra.mxu0 0
    %879 = vmatprep.subr.bf16.mxu0 0
    %880 = vmatpush1.bf16.msra.mxu0 0
    %881 = vmatprep.subr.bf16.mxu0 0
    %882 = vmatpush1.bf16.msra.mxu0 0
    %883 = vmatprep.subr.bf16.mxu0 0
    %884 = vmatpush1.bf16.msra.mxu0 0
    %885 = vmatprep.subr.bf16.mxu0 0
    %886 = vmatpush1.bf16.msra.mxu0 0
    %887 = vmatprep.mubr.bf16.mxu0 0
    %888 = vmatmul.mubr.bf16.gmra.mrb[0].mxu0 %v850
    %v889 = vpop.f32.mrb[0].mxu0
    %v890 = vadd.f32 0.0, %v889
    %v891 = vpop.f32.mrb[0].mxu0
    %v892 = vpop.f32.mrb[0].mxu0
    %v893 = vpop.f32.mrb[0].mxu0
    %894 = vdwg.mxu0
    %v895 = vpack.c.bf16 %v890, %v842
    %s896 = scalar_lea.vmem [#allocation7], 8
    %v897 = vld [vmem:[%s896] sm:$0xf]
    %v899 = vsel %vm139, %v895, 0
    %v902 = vsel %vm264, %v897, 0
    %904 = vmatprep.subr.bf16.mxu0 0
    %905 = vmatpush1.bf16.msra.mxu0 %v902
    %906 = vmatprep.subr.bf16.mxu0 0
    %907 = vmatpush1.bf16.msra.mxu0 0
    %908 = vmatprep.subr.bf16.mxu0 0
    %909 = vmatpush1.bf16.msra.mxu0 0
    %910 = vmatprep.subr.bf16.mxu0 0
    %911 = vmatpush1.bf16.msra.mxu0 0
    %912 = vmatprep.subr.bf16.mxu0 0
    %913 = vmatpush1.bf16.msra.mxu0 0
    %914 = vmatprep.subr.bf16.mxu0 0
    %915 = vmatpush1.bf16.msra.mxu0 0
    %916 = vmatprep.subr.bf16.mxu0 0
    %917 = vmatpush1.bf16.msra.mxu0 0
    %918 = vmatprep.subr.bf16.mxu0 0
    %919 = vmatpush1.bf16.msra.mxu0 0
    %920 = vmatprep.subr.bf16.mxu0 0
    %921 = vmatpush1.bf16.msra.mxu0 0
    %922 = vmatprep.subr.bf16.mxu0 0
    %923 = vmatpush1.bf16.msra.mxu0 0
    %924 = vmatprep.subr.bf16.mxu0 0
    %925 = vmatpush1.bf16.msra.mxu0 0
    %926 = vmatprep.subr.bf16.mxu0 0
    %927 = vmatpush1.bf16.msra.mxu0 0
    %928 = vmatprep.subr.bf16.mxu0 0
    %929 = vmatpush1.bf16.msra.mxu0 0
    %930 = vmatprep.subr.bf16.mxu0 0
    %931 = vmatpush1.bf16.msra.mxu0 0
    %932 = vmatprep.subr.bf16.mxu0 0
    %933 = vmatpush1.bf16.msra.mxu0 0
    %934 = vmatprep.subr.bf16.mxu0 0
    %935 = vmatpush1.bf16.msra.mxu0 0
    %936 = vmatprep.mubr.bf16.mxu0 0
    %937 = vmatmul.mubr.bf16.gmra.mrb[0].mxu0 %v899
    %v938 = vpop.f32.mrb[0].mxu0
    %v939 = vadd.f32 0.0, %v938
    %v940 = vpop.f32.mrb[0].mxu0
    %v941 = vpop.f32.mrb[0].mxu0
    %v942 = vadd.f32 0.0, %v941
    %v943 = vpop.f32.mrb[0].mxu0
    %944 = vdwg.mxu0
    %v945 = vadd.f32 %v669, %v939
    %v946 = vadd.f32 %v672, %v942
    %947 = vrot.lane.b32.xlu0 %v134, 104
    %v948 = vpop.permute.xlu0 %947
    %949 = vrot.lane.b32.xlu0 %v134, 72
    %v950 = vpop.permute.xlu0 %949
    %v952 = vsel %vm139, %v948, 0
    %v955 = vsel %vm139, %v950, 0
    %957 = vmatprep.subr.bf16.mxu0 0
    %958 = vmatpush1.bf16.xpose.msra.mxu0 %v955
    %959 = vmatprep.subr.bf16.mxu0 0
    %960 = vmatpush1.bf16.xpose.msra.mxu0 0
    %961 = vmatprep.subr.bf16.mxu0 0
    %962 = vmatpush1.bf16.xpose.msra.mxu0 0
    %963 = vmatprep.subr.bf16.mxu0 0
    %964 = vmatpush1.bf16.xpose.msra.mxu0 0
    %965 = vmatprep.subr.bf16.mxu0 0
    %966 = vmatpush1.bf16.xpose.msra.mxu0 0
    %967 = vmatprep.subr.bf16.mxu0 0
    %968 = vmatpush1.bf16.xpose.msra.mxu0 0
    %969 = vmatprep.subr.bf16.mxu0 0
    %970 = vmatpush1.bf16.xpose.msra.mxu0 0
    %971 = vmatprep.subr.bf16.mxu0 0
    %972 = vmatpush1.bf16.xpose.msra.mxu0 0
    %973 = vmatprep.subr.bf16.mxu0 0
    %974 = vmatpush1.bf16.xpose.msra.mxu0 0
    %975 = vmatprep.subr.bf16.mxu0 0
    %976 = vmatpush1.bf16.xpose.msra.mxu0 0
    %977 = vmatprep.subr.bf16.mxu0 0
    %978 = vmatpush1.bf16.xpose.msra.mxu0 0
    %979 = vmatprep.subr.bf16.mxu0 0
    %980 = vmatpush1.bf16.xpose.msra.mxu0 0
    %981 = vmatprep.subr.bf16.mxu0 0
    %982 = vmatpush1.bf16.xpose.msra.mxu0 0
    %983 = vmatprep.subr.bf16.mxu0 0
    %984 = vmatpush1.bf16.xpose.msra.mxu0 0
    %985 = vmatprep.subr.bf16.mxu0 0
    %986 = vmatpush1.bf16.xpose.msra.mxu0 0
    %987 = vmatprep.subr.bf16.mxu0 0
    %988 = vmatpush1.bf16.xpose.msra.mxu0 0
    %989 = vmatprep.mubr.bf16.mxu0 0
    %990 = vmatmul.mubr.bf16.gmra.mrb[0].mxu0 %v952
    %v991 = vpop.f32.mrb[0].mxu0
    %v992 = vadd.f32 0.0, %v991
    %v993 = vpop.f32.mrb[0].mxu0
    %v994 = vpop.f32.mrb[0].mxu0
    %v995 = vpop.f32.mrb[0].mxu0
    %996 = vdwg.mxu0
    %997 = vrot.lane.b32.xlu0 %v135, 104
    %v998 = vpop.permute.xlu0 %997
    %999 = vrot.lane.b32.xlu0 %v135, 72
    %v1000 = vpop.permute.xlu0 %999
    %v1002 = vsel %vm139, %v998, 0
    %v1005 = vsel %vm139, %v1000, 0
    %1007 = vmatprep.subr.bf16.mxu0 0
    %1008 = vmatpush1.bf16.xpose.msra.mxu0 %v1005
    %1009 = vmatprep.subr.bf16.mxu0 0
    %1010 = vmatpush1.bf16.xpose.msra.mxu0 0
    %1011 = vmatprep.subr.bf16.mxu0 0
    %1012 = vmatpush1.bf16.xpose.msra.mxu0 0
    %1013 = vmatprep.subr.bf16.mxu0 0
    %1014 = vmatpush1.bf16.xpose.msra.mxu0 0
    %1015 = vmatprep.subr.bf16.mxu0 0
    %1016 = vmatpush1.bf16.xpose.msra.mxu0 0
    %1017 = vmatprep.subr.bf16.mxu0 0
    %1018 = vmatpush1.bf16.xpose.msra.mxu0 0
    %1019 = vmatprep.subr.bf16.mxu0 0
    %1020 = vmatpush1.bf16.xpose.msra.mxu0 0
    %1021 = vmatprep.subr.bf16.mxu0 0
    %1022 = vmatpush1.bf16.xpose.msra.mxu0 0
    %1023 = vmatprep.subr.bf16.mxu0 0
    %1024 = vmatpush1.bf16.xpose.msra.mxu0 0
    %1025 = vmatprep.subr.bf16.mxu0 0
    %1026 = vmatpush1.bf16.xpose.msra.mxu0 0
    %1027 = vmatprep.subr.bf16.mxu0 0
    %1028 = vmatpush1.bf16.xpose.msra.mxu0 0
    %1029 = vmatprep.subr.bf16.mxu0 0
    %1030 = vmatpush1.bf16.xpose.msra.mxu0 0
    %1031 = vmatprep.subr.bf16.mxu0 0
    %1032 = vmatpush1.bf16.xpose.msra.mxu0 0
    %1033 = vmatprep.subr.bf16.mxu0 0
    %1034 = vmatpush1.bf16.xpose.msra.mxu0 0
    %1035 = vmatprep.subr.bf16.mxu0 0
    %1036 = vmatpush1.bf16.xpose.msra.mxu0 0
    %1037 = vmatprep.subr.bf16.mxu0 0
    %1038 = vmatpush1.bf16.xpose.msra.mxu0 0
    %1039 = vmatprep.mubr.bf16.mxu0 0
    %1040 = vmatmul.mubr.bf16.gmra.mrb[0].mxu0 %v1002
    %v1041 = vpop.f32.mrb[0].mxu0
    %v1042 = vadd.f32 0.0, %v1041
    %v1043 = vpop.f32.mrb[0].mxu0
    %v1044 = vpop.f32.mrb[0].mxu0
    %v1045 = vpop.f32.mrb[0].mxu0
    %1046 = vdwg.mxu0
    %v1047 = vsel %vm139, %v992, -inf
    %1048 = vmax.xlane.f32.xlu0 %v1047
    %v1049 = vpop.xlane.xlu0 %1048
    %v1050 = vsel %vm139, %v1042, -inf
    %1051 = vmax.xlane.f32.xlu0 %v1050
    %v1052 = vpop.xlane.xlu0 %1051
    %v1053 = vsub.f32 %v992, %v1049
    %v1054 = vsub.f32 %v1042, %v1052
    %v1055 = vmul.f32 %v1053, 1.442695
    %v1056 = vpow.pop %v1055
    %v1057 = vmul.f32 %v1054, 1.442695
    %v1058 = vpow.pop %v1057
    %v1059 = vsel %vm139, %v1056, 0.0
    %1060 = vadd.xlane.f32.xlu0 %v1059
    %v1061 = vpop.xlane.xlu0 %1060
    %v1062 = vsel %vm139, %v1058, 0.0
    %1063 = vadd.xlane.f32.xlu0 %v1062
    %v1064 = vpop.xlane.xlu0 %1063
    %v1065 = vrcp.pop %v1061
    %v1066 = vrcp.pop %v1064
    %v1067 = vmul.f32 %v1056, %v1065
    %v1068 = vmul.f32 %v1058, %v1066
    %v1069 = vpack.c.bf16 %v1067, %v1067
    %v1070 = vpack.c.bf16 %v1068, %v1068
    %1071 = vrot.lane.b32.xlu0 %v134, 40
    %v1072 = vpop.permute.xlu0 %1071
    %v1074 = vsel %vm139, %v1069, 0
    %v1077 = vsel %vm264, %v1072, 0
    %1079 = vmatprep.subr.bf16.mxu0 0
    %1080 = vmatpush1.bf16.msra.mxu0 %v1077
    %1081 = vmatprep.subr.bf16.mxu0 0
    %1082 = vmatpush1.bf16.msra.mxu0 0
    %1083 = vmatprep.subr.bf16.mxu0 0
    %1084 = vmatpush1.bf16.msra.mxu0 0
    %1085 = vmatprep.subr.bf16.mxu0 0
    %1086 = vmatpush1.bf16.msra.mxu0 0
    %1087 = vmatprep.subr.bf16.mxu0 0
    %1088 = vmatpush1.bf16.msra.mxu0 0
    %1089 = vmatprep.subr.bf16.mxu0 0
    %1090 = vmatpush1.bf16.msra.mxu0 0
    %1091 = vmatprep.subr.bf16.mxu0 0
    %1092 = vmatpush1.bf16.msra.mxu0 0
    %1093 = vmatprep.subr.bf16.mxu0 0
    %1094 = vmatpush1.bf16.msra.mxu0 0
    %1095 = vmatprep.subr.bf16.mxu0 0
    %1096 = vmatpush1.bf16.msra.mxu0 0
    %1097 = vmatprep.subr.bf16.mxu0 0
    %1098 = vmatpush1.bf16.msra.mxu0 0
    %1099 = vmatprep.subr.bf16.mxu0 0
    %1100 = vmatpush1.bf16.msra.mxu0 0
    %1101 = vmatprep.subr.bf16.mxu0 0
    %1102 = vmatpush1.bf16.msra.mxu0 0
    %1103 = vmatprep.subr.bf16.mxu0 0
    %1104 = vmatpush1.bf16.msra.mxu0 0
    %1105 = vmatprep.subr.bf16.mxu0 0
    %1106 = vmatpush1.bf16.msra.mxu0 0
    %1107 = vmatprep.subr.bf16.mxu0 0
    %1108 = vmatpush1.bf16.msra.mxu0 0
    %1109 = vmatprep.subr.bf16.mxu0 0
    %1110 = vmatpush1.bf16.msra.mxu0 0
    %1111 = vmatprep.mubr.bf16.mxu0 0
    %1112 = vmatmul.mubr.bf16.gmra.mrb[0].mxu0 %v1074
    %v1113 = vpop.f32.mrb[0].mxu0
    %v1114 = vadd.f32 0.0, %v1113
    %v1115 = vpop.f32.mrb[0].mxu0
    %v1116 = vpop.f32.mrb[0].mxu0
    %v1117 = vpop.f32.mrb[0].mxu0
    %1118 = vdwg.mxu0
    %1119 = vrot.lane.b32.xlu0 %v135, 40
    %v1120 = vpop.permute.xlu0 %1119
    %v1122 = vsel %vm139, %v1070, 0
    %v1125 = vsel %vm264, %v1120, 0
    %1127 = vmatprep.subr.bf16.mxu0 0
    %1128 = vmatpush1.bf16.msra.mxu0 %v1125
    %1129 = vmatprep.subr.bf16.mxu0 0
    %1130 = vmatpush1.bf16.msra.mxu0 0
    %1131 = vmatprep.subr.bf16.mxu0 0
    %1132 = vmatpush1.bf16.msra.mxu0 0
    %1133 = vmatprep.subr.bf16.mxu0 0
    %1134 = vmatpush1.bf16.msra.mxu0 0
    %1135 = vmatprep.subr.bf16.mxu0 0
    %1136 = vmatpush1.bf16.msra.mxu0 0
    %1137 = vmatprep.subr.bf16.mxu0 0
    %1138 = vmatpush1.bf16.msra.mxu0 0
    %1139 = vmatprep.subr.bf16.mxu0 0
    %1140 = vmatpush1.bf16.msra.mxu0 0
    %1141 = vmatprep.subr.bf16.mxu0 0
    %1142 = vmatpush1.bf16.msra.mxu0 0
    %1143 = vmatprep.subr.bf16.mxu0 0
    %1144 = vmatpush1.bf16.msra.mxu0 0
    %1145 = vmatprep.subr.bf16.mxu0 0
    %1146 = vmatpush1.bf16.msra.mxu0 0
    %1147 = vmatprep.subr.bf16.mxu0 0
    %1148 = vmatpush1.bf16.msra.mxu0 0
    %1149 = vmatprep.subr.bf16.mxu0 0
    %1150 = vmatpush1.bf16.msra.mxu0 0
    %1151 = vmatprep.subr.bf16.mxu0 0
    %1152 = vmatpush1.bf16.msra.mxu0 0
    %1153 = vmatprep.subr.bf16.mxu0 0
    %1154 = vmatpush1.bf16.msra.mxu0 0
    %1155 = vmatprep.subr.bf16.mxu0 0
    %1156 = vmatpush1.bf16.msra.mxu0 0
    %1157 = vmatprep.subr.bf16.mxu0 0
    %1158 = vmatpush1.bf16.msra.mxu0 0
    %1159 = vmatprep.mubr.bf16.mxu0 0
    %1160 = vmatmul.mubr.bf16.gmra.mrb[0].mxu0 %v1122
    %v1161 = vpop.f32.mrb[0].mxu0
    %v1162 = vadd.f32 0.0, %v1161
    %v1163 = vpop.f32.mrb[0].mxu0
    %v1164 = vpop.f32.mrb[0].mxu0
    %v1165 = vpop.f32.mrb[0].mxu0
    %1166 = vdwg.mxu0
    %v1167 = vpack.c.bf16 %v1162, %v1114
    %s1168 = scalar_lea.vmem [#allocation7], 12
    %v1169 = vld [vmem:[%s1168] sm:$0xf]
    %v1171 = vsel %vm139, %v1167, 0
    %v1174 = vsel %vm264, %v1169, 0
    %1176 = vmatprep.subr.bf16.mxu0 0
    %1177 = vmatpush1.bf16.msra.mxu0 %v1174
    %1178 = vmatprep.subr.bf16.mxu0 0
    %1179 = vmatpush1.bf16.msra.mxu0 0
    %1180 = vmatprep.subr.bf16.mxu0 0
    %1181 = vmatpush1.bf16.msra.mxu0 0
    %1182 = vmatprep.subr.bf16.mxu0 0
    %1183 = vmatpush1.bf16.msra.mxu0 0
    %1184 = vmatprep.subr.bf16.mxu0 0
    %1185 = vmatpush1.bf16.msra.mxu0 0
    %1186 = vmatprep.subr.bf16.mxu0 0
    %1187 = vmatpush1.bf16.msra.mxu0 0
    %1188 = vmatprep.subr.bf16.mxu0 0
    %1189 = vmatpush1.bf16.msra.mxu0 0
    %1190 = vmatprep.subr.bf16.mxu0 0
    %1191 = vmatpush1.bf16.msra.mxu0 0
    %1192 = vmatprep.subr.bf16.mxu0 0
    %1193 = vmatpush1.bf16.msra.mxu0 0
    %1194 = vmatprep.subr.bf16.mxu0 0
    %1195 = vmatpush1.bf16.msra.mxu0 0
    %1196 = vmatprep.subr.bf16.mxu0 0
    %1197 = vmatpush1.bf16.msra.mxu0 0
    %1198 = vmatprep.subr.bf16.mxu0 0
    %1199 = vmatpush1.bf16.msra.mxu0 0
    %1200 = vmatprep.subr.bf16.mxu0 0
    %1201 = vmatpush1.bf16.msra.mxu0 0
    %1202 = vmatprep.subr.bf16.mxu0 0
    %1203 = vmatpush1.bf16.msra.mxu0 0
    %1204 = vmatprep.subr.bf16.mxu0 0
    %1205 = vmatpush1.bf16.msra.mxu0 0
    %1206 = vmatprep.subr.bf16.mxu0 0
    %1207 = vmatpush1.bf16.msra.mxu0 0
    %1208 = vmatprep.mubr.bf16.mxu0 0
    %1209 = vmatmul.mubr.bf16.gmra.mrb[0].mxu0 %v1171
    %v1210 = vpop.f32.mrb[0].mxu0
    %v1211 = vadd.f32 0.0, %v1210
    %v1212 = vpop.f32.mrb[0].mxu0
    %v1213 = vpop.f32.mrb[0].mxu0
    %v1214 = vadd.f32 0.0, %v1213
    %v1215 = vpop.f32.mrb[0].mxu0
    %1216 = vdwg.mxu0
    %v1217 = vadd.f32 %v945, %v1211
    %v1218 = vadd.f32 %v946, %v1214
    %v1219 = vld [vmem:[%s4] sm:$0x1]
    %v1221 = vlaneseq
    %v1222 = vshrl.u32 %v1221, 7
    %v1223 = vsub.s32 0, %v1222
    %v1224 = vrot.slane %v1219, %v1223
    %v1226 = vadd.f32 %v1217, %v1224
    %v1227 = vadd.f32 %v1218, %v1224
    %1228 = vst.msk [vmem:[#allocation8] sm:$0xff] %vm89, %v1226
    %1229 = vst.msk [vmem:[#allocation8 + $0x8] sm:$0xff] %vm89, %v1227
    // Predicated region
    $region34: #{tpu_custom_call.1} parent=1 // pred_check
      _
    $region35: #{tpu_custom_call.1} parent=1 // pred_check_branch
      %1231 = sbr.rel (0) target = $region37
    $region36: #{tpu_custom_call.1} parent=1 // pred_region
      %s1233 = ssub.s32 256, 256
      %1234 = vsyncadd [#allocation4], %s1233
      %s1235 = sshll.u32 [#allocation8], 4
      %s1236 = int_to_ptr.vmem [resolvable:$true] %s1235
      %1241 = dma.vmem_to_hbm [thread:$0]  %s1236, 256, %s5, [#allocation4], 128, 128, 8
    $region37: #{tpu_custom_call.1} parent=1 // pred_fallthru
      _
    // Predicated region
    $region38: #{tpu_custom_call.1} parent=1 // pred_check
      _
    $region39: #{tpu_custom_call.1} parent=1 // pred_check_branch
      %1243 = sbr.rel (0) target = $region41
    $region40: #{tpu_custom_call.1} parent=1 // pred_region
      %1244 = dma.done [#allocation4], 256
    $region41: #{tpu_custom_call.1} parent=1 // pred_fallthru
      _
    %1245 = vsyncpa [#allocation3], 1
    %1246 = vsyncpa [#allocation6], 1
    %1247 = vsyncpa [#allocation4], 1

</llo_original>
